<compile_context>
chip_gen: v6e
topology: v6e:2x2x1
jax: 0.10.0
libtpu: 0.0.40
codegen_flags: <defaults>
</compile_context>

<pallas_src>
import math
import functools

import jax
import jax.numpy as jnp
from jax.experimental import pallas as pl
from jax.experimental.pallas import tpu as pltpu

EPS = 1e-6  # matches partial(nn.LayerNorm, eps=1e-06)


# ---------------------------------------------------------------------------
# In-kernel math helpers (f32)
# ---------------------------------------------------------------------------
def _layernorm(x, g, b):
    mu = jnp.mean(x, axis=-1, keepdims=True)
    var = jnp.mean(jnp.square(x - mu), axis=-1, keepdims=True)   # biased var (PyTorch LN)
    return (x - mu) * jax.lax.rsqrt(var + EPS) * g + b


def _gelu_exact(x):
    # nn.GELU() default = exact erf-based GELU (kept exact for semantic fidelity)
    return 0.5 * x * (1.0 + jax.lax.erf(x * (1.0 / math.sqrt(2.0))))


# ---------------------------------------------------------------------------
# Kernels
# ---------------------------------------------------------------------------
def encoder_block_kernel(num_heads, apply_final_ln,
                         x_ref,
                         ln1_g, ln1_b,
                         wqkv_t, bqkv,
                         wo_t, bo,
                         ln2_g, ln2_b,
                         w1_t, b1,
                         w2_t, b2,
                         fln_g, fln_b,
                         out_ref):
    x_in = x_ref[0]                                   # (S, D) f32
    S, D = x_in.shape
    hd = D // num_heads
    scale = 1.0 / math.sqrt(hd)

    # Hoist small parameters once (JAX does not CSE broadcast_in_dim).
    g1 = ln1_g[0]
    be1 = ln1_b[0]
    g2 = ln2_g[0]
    be2 = ln2_b[0]
    b_qkv = bqkv[0]
    b_o = bo[0]
    b_fc1 = b1[0]
    b_fc2 = b2[0]
    wqkv = wqkv_t[...]                                # (D, 3D)  bf16
    wo = wo_t[...]                                    # (D, D)   bf16
    w1 = w1_t[...]                                    # (D, mlp) bf16
    w2 = w2_t[...]                                    # (mlp, D) bf16

    # ---- ln_1 + multi-head self-attention + residual ----
    x_ln = _layernorm(x_in, g1, be1)
    qkv = jnp.dot(x_ln.astype(jnp.bfloat16), wqkv,
                  preferred_element_type=jnp.float32) + b_qkv
    q = qkv[:, 0 * D:1 * D]
    k = qkv[:, 1 * D:2 * D]
    v = qkv[:, 2 * D:3 * D]

    # Per-head attention with the output projection folded into the head loop:
    # no lane-axis concatenate; H accumulating (S,hd)x(hd,D) MXU matmuls instead.
    attn = jnp.zeros((S, D), jnp.float32)
    for h in range(num_heads):                        # static, small head count
        sl = slice(h * hd, (h + 1) * hd)
        qh = q[:, sl].astype(jnp.bfloat16)
        kh = k[:, sl].astype(jnp.bfloat16)
        vh = v[:, sl].astype(jnp.bfloat16)
        # scores: contract head dim of both (q @ k.T) without an explicit transpose
        s = jax.lax.dot_general(qh, kh, (((1,), (1,)), ((), ())),
                                preferred_element_type=jnp.float32) * scale
        s = s - jnp.max(s, axis=-1, keepdims=True)
        p = jnp.exp(s)                                # attention_dropout = 0 -> identity
        p = p * pl.reciprocal(jnp.sum(p, axis=-1, keepdims=True), approx=True)
        head = jnp.dot(p.astype(jnp.bfloat16), vh,
                       preferred_element_type=jnp.float32)
        attn = attn + jnp.dot(head.astype(jnp.bfloat16), wo[sl, :],
                              preferred_element_type=jnp.float32)
    x = attn + b_o + x_in                             # dropout = 0 -> identity

    # ---- ln_2 + MLP (Linear -> GELU -> Linear) + residual ----
    y = _layernorm(x, g2, be2)
    y = jnp.dot(y.astype(jnp.bfloat16), w1, preferred_element_type=jnp.float32) + b_fc1
    y = _gelu_exact(y)
    y = jnp.dot(y.astype(jnp.bfloat16), w2, preferred_element_type=jnp.float32) + b_fc2
    out = x + y

    if apply_final_ln:                                # static flag: fused Encoder.ln
        out = _layernorm(out, fln_g[0], fln_b[0])
    out_ref[0] = out


def final_ln_kernel(x_ref, g_ref, b_ref, out_ref):
    # Fallback only (num_layers == 0); normally the final LN is fused above.
    out_ref[0] = _layernorm(x_ref[0], g_ref[0], b_ref[0])


# ---------------------------------------------------------------------------
# Wrappers
# ---------------------------------------------------------------------------
def _full_spec(shape):
    # whole array resident each grid step (block index 0 along every axis)
    n = len(shape)
    return pl.BlockSpec(shape, lambda b, _n=n: (0,) * _n)


def _vmem_limit_bytes(S, D, mlp_dim):
    # Per-grid-step residency budget: bf16 weights + f32 activations/intermediates,
    # with headroom for double buffering; capped at 64 MiB (v7x physical VMEM/TC).
    wts_bf16 = (D * 3 * D + D * D + 2 * D * mlp_dim) * 2
    acts_f32 = S * (3 * D + mlp_dim + 6 * D) * 4
    need = 3 * (wts_bf16 + acts_f32)
    return int(min(max(need, 16 * 1024 * 1024), 64 * 1024 * 1024))


def encoder_block(x, p, num_heads, final_g, final_b, apply_final_ln):
    B, S, D = x.shape
    mlp_dim = p["w1_t"].shape[1]
    weights = [
        p["ln1_g"], p["ln1_b"],
        p["wqkv_t"], p["bqkv"],
        p["wo_t"], p["bo"],
        p["ln2_g"], p["ln2_b"],
        p["w1_t"], p["b1"],
        p["w2_t"], p["b2"],
        final_g, final_b,
    ]
    in_specs = [pl.BlockSpec((1, S, D), lambda b: (b, 0, 0))]
    in_specs += [_full_spec(w.shape) for w in weights]
    return pl.pallas_call(
        functools.partial(encoder_block_kernel, num_heads, apply_final_ln),
        out_shape=jax.ShapeDtypeStruct((B, S, D), x.dtype),
        grid=(B,),
        in_specs=in_specs,
        out_specs=pl.BlockSpec((1, S, D), lambda b: (b, 0, 0)),
        compiler_params=pltpu.CompilerParams(
            dimension_semantics=("parallel",),
            vmem_limit_bytes=_vmem_limit_bytes(S, D, mlp_dim)),
    )(x, *weights)


def final_layernorm(x, g, b):
    B, S, D = x.shape
    return pl.pallas_call(
        final_ln_kernel,
        out_shape=jax.ShapeDtypeStruct((B, S, D), x.dtype),
        grid=(B,),
        in_specs=[pl.BlockSpec((1, S, D), lambda b: (b, 0, 0)),
                  _full_spec(g.shape), _full_spec(b.shape)],
        out_specs=pl.BlockSpec((1, S, D), lambda b: (b, 0, 0)),
        compiler_params=pltpu.CompilerParams(dimension_semantics=("parallel",)),
    )(x, g, b)


def encoder_forward(x, layer_params, final_g, final_b, num_heads):
    # Encoder.forward: dropout(p=0 -> identity) -> stacked EncoderBlocks -> final LN.
    # The final LayerNorm is fused into the last block's kernel.
    if not layer_params:
        return final_layernorm(x, final_g, final_b)
    n = len(layer_params)
    for i, p in enumerate(layer_params):
        x = encoder_block(x, p, num_heads, final_g, final_b,
                          apply_final_ln=(i == n - 1))
    return x


# ---------------------------------------------------------------------------
# Deterministic parameter construction (shapes from the module's __init__)
# ---------------------------------------------------------------------------
def init_params(key, num_layers, hidden_dim, mlp_dim):
    D = hidden_dim
    bound = math.sqrt(3.0 / D)            # nn.init.uniform_(in_proj / out_proj, -bound, bound)
    lim = math.sqrt(6.0 / (D + mlp_dim))  # xavier-uniform-style for MLP linears
    layers = []
    for i in range(num_layers):
        ks = jax.random.split(jax.random.fold_in(key, i), 6)
        wqkv = jax.random.uniform(ks[0], (3 * D, D), jnp.float32, -bound, bound)
        wo = jax.random.uniform(ks[1], (D, D), jnp.float32, -bound, bound)
        w1 = jax.random.uniform(ks[2], (mlp_dim, D), jnp.float32, -lim, lim)
        w2 = jax.random.uniform(ks[3], (D, mlp_dim), jnp.float32, -lim, lim)
        b1 = 1e-6 * jax.random.normal(ks[4], (mlp_dim,), jnp.float32)
        b2 = 1e-6 * jax.random.normal(ks[5], (D,), jnp.float32)
        layers.append(dict(
            ln1_g=jnp.ones((1, D), jnp.float32), ln1_b=jnp.zeros((1, D), jnp.float32),
            # matmul weights pre-transposed and stored in bf16 (MXU-native, half DMA bytes)
            wqkv_t=wqkv.T.astype(jnp.bfloat16), bqkv=jnp.zeros((1, 3 * D), jnp.float32),
            wo_t=wo.T.astype(jnp.bfloat16), bo=jnp.zeros((1, D), jnp.float32),
            ln2_g=jnp.ones((1, D), jnp.float32), ln2_b=jnp.zeros((1, D), jnp.float32),
            w1_t=w1.T.astype(jnp.bfloat16), b1=b1.reshape(1, mlp_dim),
            w2_t=w2.T.astype(jnp.bfloat16), b2=b2.reshape(1, D),
        ))
    return layers


if __name__ == "__main__":
    # Small, shape-consistent config: seq_length=8, num_layers=2, num_heads=4,
    # hidden_dim=32, mlp_dim=64, dropout=0.0, attention_dropout=0.0
    B, S, D, H, MLP, L = 2, 8, 32, 4, 64, 2

    key = jax.random.PRNGKey(0)
    x = jax.random.normal(key, (B, S, D), dtype=jnp.float32)

    layer_params = init_params(jax.random.PRNGKey(1), L, D, MLP)
    final_g = jnp.ones((1, D), jnp.float32)
    final_b = jnp.zeros((1, D), jnp.float32)

    out = encoder_forward(x, layer_params, final_g, final_b, H)
    out = jax.block_until_ready(out)
    assert out.shape == (B, S, D) and out.dtype == jnp.float32
    assert bool(jnp.all(jnp.isfinite(out)))
    print("KERNEL_OK")
</pallas_src>

<mosaic_0001>
module attributes {stable_mosaic.version = 11 : i64} {
  func.func @encoder_block_kernel(%arg0: i32, %arg1: memref<1x8x32xf32, #tpu.memory_space<vmem>>, %arg2: memref<1x32xf32, #tpu.memory_space<vmem>>, %arg3: memref<1x32xf32, #tpu.memory_space<vmem>>, %arg4: memref<32x96xbf16, #tpu.memory_space<vmem>>, %arg5: memref<1x96xf32, #tpu.memory_space<vmem>>, %arg6: memref<32x32xbf16, #tpu.memory_space<vmem>>, %arg7: memref<1x32xf32, #tpu.memory_space<vmem>>, %arg8: memref<1x32xf32, #tpu.memory_space<vmem>>, %arg9: memref<1x32xf32, #tpu.memory_space<vmem>>, %arg10: memref<32x64xbf16, #tpu.memory_space<vmem>>, %arg11: memref<1x64xf32, #tpu.memory_space<vmem>>, %arg12: memref<64x32xbf16, #tpu.memory_space<vmem>>, %arg13: memref<1x32xf32, #tpu.memory_space<vmem>>, %arg14: memref<1x32xf32, #tpu.memory_space<vmem>>, %arg15: memref<1x32xf32, #tpu.memory_space<vmem>>, %arg16: memref<1x8x32xf32, #tpu.memory_space<vmem>>) attributes {dimension_semantics = [#tpu.dimension_semantics<parallel>], iteration_bounds = array<i64: 2>, scalar_prefetch = 0 : i64, scratch_operands = 0 : i64, tpu.core_type = #tpu.core_type<tc>, window_params = [{transform_indices = @transform_0, window_bounds = array<i64: 1, 8, 32>}, {pipeline_mode = #tpu.pipeline_mode<synchronous>, transform_indices = @transform_1, window_bounds = array<i64: 1, 32>}, {pipeline_mode = #tpu.pipeline_mode<synchronous>, transform_indices = @transform_2, window_bounds = array<i64: 1, 32>}, {pipeline_mode = #tpu.pipeline_mode<synchronous>, transform_indices = @transform_3, window_bounds = array<i64: 32, 96>}, {pipeline_mode = #tpu.pipeline_mode<synchronous>, transform_indices = @transform_4, window_bounds = array<i64: 1, 96>}, {pipeline_mode = #tpu.pipeline_mode<synchronous>, transform_indices = @transform_5, window_bounds = array<i64: 32, 32>}, {pipeline_mode = #tpu.pipeline_mode<synchronous>, transform_indices = @transform_6, window_bounds = array<i64: 1, 32>}, {pipeline_mode = #tpu.pipeline_mode<synchronous>, transform_indices = @transform_7, window_bounds = array<i64: 1, 32>}, {pipeline_mode = #tpu.pipeline_mode<synchronous>, transform_indices = @transform_8, window_bounds = array<i64: 1, 32>}, {pipeline_mode = #tpu.pipeline_mode<synchronous>, transform_indices = @transform_9, window_bounds = array<i64: 32, 64>}, {pipeline_mode = #tpu.pipeline_mode<synchronous>, transform_indices = @transform_10, window_bounds = array<i64: 1, 64>}, {pipeline_mode = #tpu.pipeline_mode<synchronous>, transform_indices = @transform_11, window_bounds = array<i64: 64, 32>}, {pipeline_mode = #tpu.pipeline_mode<synchronous>, transform_indices = @transform_12, window_bounds = array<i64: 1, 32>}, {pipeline_mode = #tpu.pipeline_mode<synchronous>, transform_indices = @transform_13, window_bounds = array<i64: 1, 32>}, {pipeline_mode = #tpu.pipeline_mode<synchronous>, transform_indices = @transform_14, window_bounds = array<i64: 1, 32>}, {transform_indices = @transform_15, window_bounds = array<i64: 1, 8, 32>}]} {
    %c0 = arith.constant 0 : index
    %c0_0 = arith.constant 0 : index
    %c0_1 = arith.constant 0 : index
    %0 = vector.load %arg1[%c0, %c0_0, %c0_1] : memref<1x8x32xf32, #tpu.memory_space<vmem>>, vector<1x8x32xf32>
    %1 = vector.shape_cast %0 : vector<1x8x32xf32> to vector<8x32xf32>
    %c0_2 = arith.constant 0 : index
    %c0_3 = arith.constant 0 : index
    %2 = vector.load %arg2[%c0_2, %c0_3] : memref<1x32xf32, #tpu.memory_space<vmem>>, vector<1x32xf32>
    %3 = vector.shape_cast %2 : vector<1x32xf32> to vector<32xf32>
    %c0_4 = arith.constant 0 : index
    %c0_5 = arith.constant 0 : index
    %4 = vector.load %arg3[%c0_4, %c0_5] : memref<1x32xf32, #tpu.memory_space<vmem>>, vector<1x32xf32>
    %5 = vector.shape_cast %4 : vector<1x32xf32> to vector<32xf32>
    %c0_6 = arith.constant 0 : index
    %c0_7 = arith.constant 0 : index
    %6 = vector.load %arg8[%c0_6, %c0_7] : memref<1x32xf32, #tpu.memory_space<vmem>>, vector<1x32xf32>
    %7 = vector.shape_cast %6 : vector<1x32xf32> to vector<32xf32>
    %c0_8 = arith.constant 0 : index
    %c0_9 = arith.constant 0 : index
    %8 = vector.load %arg9[%c0_8, %c0_9] : memref<1x32xf32, #tpu.memory_space<vmem>>, vector<1x32xf32>
    %9 = vector.shape_cast %8 : vector<1x32xf32> to vector<32xf32>
    %c0_10 = arith.constant 0 : index
    %c0_11 = arith.constant 0 : index
    %10 = vector.load %arg5[%c0_10, %c0_11] : memref<1x96xf32, #tpu.memory_space<vmem>>, vector<1x96xf32>
    %11 = vector.shape_cast %10 : vector<1x96xf32> to vector<96xf32>
    %c0_12 = arith.constant 0 : index
    %c0_13 = arith.constant 0 : index
    %12 = vector.load %arg7[%c0_12, %c0_13] : memref<1x32xf32, #tpu.memory_space<vmem>>, vector<1x32xf32>
    %13 = vector.shape_cast %12 : vector<1x32xf32> to vector<32xf32>
    %c0_14 = arith.constant 0 : index
    %c0_15 = arith.constant 0 : index
    %14 = vector.load %arg11[%c0_14, %c0_15] : memref<1x64xf32, #tpu.memory_space<vmem>>, vector<1x64xf32>
    %15 = vector.shape_cast %14 : vector<1x64xf32> to vector<64xf32>
    %c0_16 = arith.constant 0 : index
    %c0_17 = arith.constant 0 : index
    %16 = vector.load %arg13[%c0_16, %c0_17] : memref<1x32xf32, #tpu.memory_space<vmem>>, vector<1x32xf32>
    %17 = vector.shape_cast %16 : vector<1x32xf32> to vector<32xf32>
    %c0_18 = arith.constant 0 : index
    %c0_19 = arith.constant 0 : index
    %18 = vector.load %arg4[%c0_18, %c0_19] : memref<32x96xbf16, #tpu.memory_space<vmem>>, vector<32x96xbf16>
    %c0_20 = arith.constant 0 : index
    %c0_21 = arith.constant 0 : index
    %19 = vector.load %arg6[%c0_20, %c0_21] : memref<32x32xbf16, #tpu.memory_space<vmem>>, vector<32x32xbf16>
    %c0_22 = arith.constant 0 : index
    %c0_23 = arith.constant 0 : index
    %20 = vector.load %arg10[%c0_22, %c0_23] : memref<32x64xbf16, #tpu.memory_space<vmem>>, vector<32x64xbf16>
    %c0_24 = arith.constant 0 : index
    %c0_25 = arith.constant 0 : index
    %21 = vector.load %arg12[%c0_24, %c0_25] : memref<64x32xbf16, #tpu.memory_space<vmem>>, vector<64x32xbf16>
    %cst = arith.constant dense<0.000000e+00> : vector<8xf32>
    %22 = vector.multi_reduction <add>, %1, %cst [1] : vector<8x32xf32> to vector<8xf32>
    %23 = vector.shape_cast %22 : vector<8xf32> to vector<8x1xf32>
    %cst_26 = arith.constant 3.200000e+01 : f32
    %24 = vector.broadcast %cst_26 : f32 to vector<8x1xf32>
    %25 = arith.divf %23, %24 : vector<8x1xf32>
    %26 = vector.broadcast %25 : vector<8x1xf32> to vector<8x32xf32>
    %27 = arith.subf %1, %26 : vector<8x32xf32>
    %28 = arith.mulf %27, %27 : vector<8x32xf32>
    %cst_27 = arith.constant dense<0.000000e+00> : vector<8xf32>
    %29 = vector.multi_reduction <add>, %28, %cst_27 [1] : vector<8x32xf32> to vector<8xf32>
    %30 = vector.shape_cast %29 : vector<8xf32> to vector<8x1xf32>
    %cst_28 = arith.constant 3.200000e+01 : f32
    %31 = vector.broadcast %cst_28 : f32 to vector<8x1xf32>
    %32 = arith.divf %30, %31 : vector<8x1xf32>
    %33 = vector.broadcast %25 : vector<8x1xf32> to vector<8x32xf32>
    %34 = arith.subf %1, %33 : vector<8x32xf32>
    %cst_29 = arith.constant 9.99999997E-7 : f32
    %35 = vector.broadcast %cst_29 : f32 to vector<8x1xf32>
    %36 = arith.addf %32, %35 : vector<8x1xf32>
    %37 = math.rsqrt %36 : vector<8x1xf32>
    %38 = vector.broadcast %37 : vector<8x1xf32> to vector<8x32xf32>
    %39 = arith.mulf %34, %38 : vector<8x32xf32>
    %40 = vector.shape_cast %3 : vector<32xf32> to vector<1x32xf32>
    %41 = vector.broadcast %40 : vector<1x32xf32> to vector<8x32xf32>
    %42 = arith.mulf %39, %41 : vector<8x32xf32>
    %43 = vector.shape_cast %5 : vector<32xf32> to vector<1x32xf32>
    %44 = vector.broadcast %43 : vector<1x32xf32> to vector<8x32xf32>
    %45 = arith.addf %42, %44 : vector<8x32xf32>
    %46 = arith.truncf %45 : vector<8x32xf32> to vector<8x32xbf16>
    %cst_30 = arith.constant dense<0.000000e+00> : vector<8x96xf32>
    %47 = tpu.matmul %46, %18, %cst_30 {dimension_numbers = #tpu.dot_dimension_numbers<[1], [0], [0], [1], [0, 0, 1, 1], [], []>} : vector<8x32xbf16>, vector<32x96xbf16>, vector<8x96xf32> -> vector<8x96xf32>
    %48 = vector.shape_cast %11 : vector<96xf32> to vector<1x96xf32>
    %49 = vector.broadcast %48 : vector<1x96xf32> to vector<8x96xf32>
    %50 = arith.addf %47, %49 : vector<8x96xf32>
    %51 = vector.extract_strided_slice %50 {offsets = [0, 0], sizes = [8, 32], strides = [1, 1]} : vector<8x96xf32> to vector<8x32xf32>
    %52 = vector.extract_strided_slice %50 {offsets = [0, 32], sizes = [8, 32], strides = [1, 1]} : vector<8x96xf32> to vector<8x32xf32>
    %53 = vector.extract_strided_slice %50 {offsets = [0, 64], sizes = [8, 32], strides = [1, 1]} : vector<8x96xf32> to vector<8x32xf32>
    %cst_31 = arith.constant 0.000000e+00 : f32
    %54 = vector.broadcast %cst_31 : f32 to vector<8x32xf32>
    %55 = vector.extract_strided_slice %51 {offsets = [0, 0], sizes = [8, 8], strides = [1, 1]} : vector<8x32xf32> to vector<8x8xf32>
    %56 = arith.truncf %55 : vector<8x8xf32> to vector<8x8xbf16>
    %57 = vector.extract_strided_slice %52 {offsets = [0, 0], sizes = [8, 8], strides = [1, 1]} : vector<8x32xf32> to vector<8x8xf32>
    %58 = arith.truncf %57 : vector<8x8xf32> to vector<8x8xbf16>
    %59 = vector.extract_strided_slice %53 {offsets = [0, 0], sizes = [8, 8], strides = [1, 1]} : vector<8x32xf32> to vector<8x8xf32>
    %60 = arith.truncf %59 : vector<8x8xf32> to vector<8x8xbf16>
    %cst_32 = arith.constant dense<0.000000e+00> : vector<8x8xf32>
    %61 = tpu.matmul %56, %58, %cst_32 {dimension_numbers = #tpu.dot_dimension_numbers<[1], [1], [0], [0], [0, 0, 1, 0], [], []>} : vector<8x8xbf16>, vector<8x8xbf16>, vector<8x8xf32> -> vector<8x8xf32>
    %cst_33 = arith.constant 0.353553385 : f32
    %62 = vector.broadcast %cst_33 : f32 to vector<8x8xf32>
    %63 = arith.mulf %61, %62 : vector<8x8xf32>
    %cst_34 = arith.constant dense<0xFF800000> : vector<8xf32>
    %64 = vector.multi_reduction <maximumf>, %63, %cst_34 [1] : vector<8x8xf32> to vector<8xf32>
    %65 = vector.shape_cast %64 : vector<8xf32> to vector<8x1xf32>
    %66 = vector.broadcast %65 : vector<8x1xf32> to vector<8x8xf32>
    %67 = arith.subf %63, %66 : vector<8x8xf32>
    %68 = math.exp %67 : vector<8x8xf32>
    %cst_35 = arith.constant dense<0.000000e+00> : vector<8xf32>
    %69 = vector.multi_reduction <add>, %68, %cst_35 [1] : vector<8x8xf32> to vector<8xf32>
    %70 = vector.shape_cast %69 : vector<8xf32> to vector<8x1xf32>
    %71 = tpu.reciprocal %70 {approx = true} : vector<8x1xf32> -> vector<8x1xf32>
    %72 = vector.broadcast %71 : vector<8x1xf32> to vector<8x8xf32>
    %73 = arith.mulf %68, %72 : vector<8x8xf32>
    %74 = arith.truncf %73 : vector<8x8xf32> to vector<8x8xbf16>
    %cst_36 = arith.constant dense<0.000000e+00> : vector<8x8xf32>
    %75 = tpu.matmul %74, %60, %cst_36 {dimension_numbers = #tpu.dot_dimension_numbers<[1], [0], [0], [1], [0, 0, 1, 1], [], []>} : vector<8x8xbf16>, vector<8x8xbf16>, vector<8x8xf32> -> vector<8x8xf32>
    %76 = arith.truncf %75 : vector<8x8xf32> to vector<8x8xbf16>
    %77 = vector.extract_strided_slice %19 {offsets = [0, 0], sizes = [8, 32], strides = [1, 1]} : vector<32x32xbf16> to vector<8x32xbf16>
    %cst_37 = arith.constant dense<0.000000e+00> : vector<8x32xf32>
    %78 = tpu.matmul %76, %77, %cst_37 {dimension_numbers = #tpu.dot_dimension_numbers<[1], [0], [0], [1], [0, 0, 1, 1], [], []>} : vector<8x8xbf16>, vector<8x32xbf16>, vector<8x32xf32> -> vector<8x32xf32>
    %79 = arith.addf %54, %78 : vector<8x32xf32>
    %80 = vector.extract_strided_slice %51 {offsets = [0, 8], sizes = [8, 8], strides = [1, 1]} : vector<8x32xf32> to vector<8x8xf32>
    %81 = arith.truncf %80 : vector<8x8xf32> to vector<8x8xbf16>
    %82 = vector.extract_strided_slice %52 {offsets = [0, 8], sizes = [8, 8], strides = [1, 1]} : vector<8x32xf32> to vector<8x8xf32>
    %83 = arith.truncf %82 : vector<8x8xf32> to vector<8x8xbf16>
    %84 = vector.extract_strided_slice %53 {offsets = [0, 8], sizes = [8, 8], strides = [1, 1]} : vector<8x32xf32> to vector<8x8xf32>
    %85 = arith.truncf %84 : vector<8x8xf32> to vector<8x8xbf16>
    %cst_38 = arith.constant dense<0.000000e+00> : vector<8x8xf32>
    %86 = tpu.matmul %81, %83, %cst_38 {dimension_numbers = #tpu.dot_dimension_numbers<[1], [1], [0], [0], [0, 0, 1, 0], [], []>} : vector<8x8xbf16>, vector<8x8xbf16>, vector<8x8xf32> -> vector<8x8xf32>
    %cst_39 = arith.constant 0.353553385 : f32
    %87 = vector.broadcast %cst_39 : f32 to vector<8x8xf32>
    %88 = arith.mulf %86, %87 : vector<8x8xf32>
    %cst_40 = arith.constant dense<0xFF800000> : vector<8xf32>
    %89 = vector.multi_reduction <maximumf>, %88, %cst_40 [1] : vector<8x8xf32> to vector<8xf32>
    %90 = vector.shape_cast %89 : vector<8xf32> to vector<8x1xf32>
    %91 = vector.broadcast %90 : vector<8x1xf32> to vector<8x8xf32>
    %92 = arith.subf %88, %91 : vector<8x8xf32>
    %93 = math.exp %92 : vector<8x8xf32>
    %cst_41 = arith.constant dense<0.000000e+00> : vector<8xf32>
    %94 = vector.multi_reduction <add>, %93, %cst_41 [1] : vector<8x8xf32> to vector<8xf32>
    %95 = vector.shape_cast %94 : vector<8xf32> to vector<8x1xf32>
    %96 = tpu.reciprocal %95 {approx = true} : vector<8x1xf32> -> vector<8x1xf32>
    %97 = vector.broadcast %96 : vector<8x1xf32> to vector<8x8xf32>
    %98 = arith.mulf %93, %97 : vector<8x8xf32>
    %99 = arith.truncf %98 : vector<8x8xf32> to vector<8x8xbf16>
    %cst_42 = arith.constant dense<0.000000e+00> : vector<8x8xf32>
    %100 = tpu.matmul %99, %85, %cst_42 {dimension_numbers = #tpu.dot_dimension_numbers<[1], [0], [0], [1], [0, 0, 1, 1], [], []>} : vector<8x8xbf16>, vector<8x8xbf16>, vector<8x8xf32> -> vector<8x8xf32>
    %101 = arith.truncf %100 : vector<8x8xf32> to vector<8x8xbf16>
    %102 = vector.extract_strided_slice %19 {offsets = [8, 0], sizes = [8, 32], strides = [1, 1]} : vector<32x32xbf16> to vector<8x32xbf16>
    %cst_43 = arith.constant dense<0.000000e+00> : vector<8x32xf32>
    %103 = tpu.matmul %101, %102, %cst_43 {dimension_numbers = #tpu.dot_dimension_numbers<[1], [0], [0], [1], [0, 0, 1, 1], [], []>} : vector<8x8xbf16>, vector<8x32xbf16>, vector<8x32xf32> -> vector<8x32xf32>
    %104 = arith.addf %79, %103 : vector<8x32xf32>
    %105 = vector.extract_strided_slice %51 {offsets = [0, 16], sizes = [8, 8], strides = [1, 1]} : vector<8x32xf32> to vector<8x8xf32>
    %106 = arith.truncf %105 : vector<8x8xf32> to vector<8x8xbf16>
    %107 = vector.extract_strided_slice %52 {offsets = [0, 16], sizes = [8, 8], strides = [1, 1]} : vector<8x32xf32> to vector<8x8xf32>
    %108 = arith.truncf %107 : vector<8x8xf32> to vector<8x8xbf16>
    %109 = vector.extract_strided_slice %53 {offsets = [0, 16], sizes = [8, 8], strides = [1, 1]} : vector<8x32xf32> to vector<8x8xf32>
    %110 = arith.truncf %109 : vector<8x8xf32> to vector<8x8xbf16>
    %cst_44 = arith.constant dense<0.000000e+00> : vector<8x8xf32>
    %111 = tpu.matmul %106, %108, %cst_44 {dimension_numbers = #tpu.dot_dimension_numbers<[1], [1], [0], [0], [0, 0, 1, 0], [], []>} : vector<8x8xbf16>, vector<8x8xbf16>, vector<8x8xf32> -> vector<8x8xf32>
    %cst_45 = arith.constant 0.353553385 : f32
    %112 = vector.broadcast %cst_45 : f32 to vector<8x8xf32>
    %113 = arith.mulf %111, %112 : vector<8x8xf32>
    %cst_46 = arith.constant dense<0xFF800000> : vector<8xf32>
    %114 = vector.multi_reduction <maximumf>, %113, %cst_46 [1] : vector<8x8xf32> to vector<8xf32>
    %115 = vector.shape_cast %114 : vector<8xf32> to vector<8x1xf32>
    %116 = vector.broadcast %115 : vector<8x1xf32> to vector<8x8xf32>
    %117 = arith.subf %113, %116 : vector<8x8xf32>
    %118 = math.exp %117 : vector<8x8xf32>
    %cst_47 = arith.constant dense<0.000000e+00> : vector<8xf32>
    %119 = vector.multi_reduction <add>, %118, %cst_47 [1] : vector<8x8xf32> to vector<8xf32>
    %120 = vector.shape_cast %119 : vector<8xf32> to vector<8x1xf32>
    %121 = tpu.reciprocal %120 {approx = true} : vector<8x1xf32> -> vector<8x1xf32>
    %122 = vector.broadcast %121 : vector<8x1xf32> to vector<8x8xf32>
    %123 = arith.mulf %118, %122 : vector<8x8xf32>
    %124 = arith.truncf %123 : vector<8x8xf32> to vector<8x8xbf16>
    %cst_48 = arith.constant dense<0.000000e+00> : vector<8x8xf32>
    %125 = tpu.matmul %124, %110, %cst_48 {dimension_numbers = #tpu.dot_dimension_numbers<[1], [0], [0], [1], [0, 0, 1, 1], [], []>} : vector<8x8xbf16>, vector<8x8xbf16>, vector<8x8xf32> -> vector<8x8xf32>
    %126 = arith.truncf %125 : vector<8x8xf32> to vector<8x8xbf16>
    %127 = vector.extract_strided_slice %19 {offsets = [16, 0], sizes = [8, 32], strides = [1, 1]} : vector<32x32xbf16> to vector<8x32xbf16>
    %cst_49 = arith.constant dense<0.000000e+00> : vector<8x32xf32>
    %128 = tpu.matmul %126, %127, %cst_49 {dimension_numbers = #tpu.dot_dimension_numbers<[1], [0], [0], [1], [0, 0, 1, 1], [], []>} : vector<8x8xbf16>, vector<8x32xbf16>, vector<8x32xf32> -> vector<8x32xf32>
    %129 = arith.addf %104, %128 : vector<8x32xf32>
    %130 = vector.extract_strided_slice %51 {offsets = [0, 24], sizes = [8, 8], strides = [1, 1]} : vector<8x32xf32> to vector<8x8xf32>
    %131 = arith.truncf %130 : vector<8x8xf32> to vector<8x8xbf16>
    %132 = vector.extract_strided_slice %52 {offsets = [0, 24], sizes = [8, 8], strides = [1, 1]} : vector<8x32xf32> to vector<8x8xf32>
    %133 = arith.truncf %132 : vector<8x8xf32> to vector<8x8xbf16>
    %134 = vector.extract_strided_slice %53 {offsets = [0, 24], sizes = [8, 8], strides = [1, 1]} : vector<8x32xf32> to vector<8x8xf32>
    %135 = arith.truncf %134 : vector<8x8xf32> to vector<8x8xbf16>
    %cst_50 = arith.constant dense<0.000000e+00> : vector<8x8xf32>
    %136 = tpu.matmul %131, %133, %cst_50 {dimension_numbers = #tpu.dot_dimension_numbers<[1], [1], [0], [0], [0, 0, 1, 0], [], []>} : vector<8x8xbf16>, vector<8x8xbf16>, vector<8x8xf32> -> vector<8x8xf32>
    %cst_51 = arith.constant 0.353553385 : f32
    %137 = vector.broadcast %cst_51 : f32 to vector<8x8xf32>
    %138 = arith.mulf %136, %137 : vector<8x8xf32>
    %cst_52 = arith.constant dense<0xFF800000> : vector<8xf32>
    %139 = vector.multi_reduction <maximumf>, %138, %cst_52 [1] : vector<8x8xf32> to vector<8xf32>
    %140 = vector.shape_cast %139 : vector<8xf32> to vector<8x1xf32>
    %141 = vector.broadcast %140 : vector<8x1xf32> to vector<8x8xf32>
    %142 = arith.subf %138, %141 : vector<8x8xf32>
    %143 = math.exp %142 : vector<8x8xf32>
    %cst_53 = arith.constant dense<0.000000e+00> : vector<8xf32>
    %144 = vector.multi_reduction <add>, %143, %cst_53 [1] : vector<8x8xf32> to vector<8xf32>
    %145 = vector.shape_cast %144 : vector<8xf32> to vector<8x1xf32>
    %146 = tpu.reciprocal %145 {approx = true} : vector<8x1xf32> -> vector<8x1xf32>
    %147 = vector.broadcast %146 : vector<8x1xf32> to vector<8x8xf32>
    %148 = arith.mulf %143, %147 : vector<8x8xf32>
    %149 = arith.truncf %148 : vector<8x8xf32> to vector<8x8xbf16>
    %cst_54 = arith.constant dense<0.000000e+00> : vector<8x8xf32>
    %150 = tpu.matmul %149, %135, %cst_54 {dimension_numbers = #tpu.dot_dimension_numbers<[1], [0], [0], [1], [0, 0, 1, 1], [], []>} : vector<8x8xbf16>, vector<8x8xbf16>, vector<8x8xf32> -> vector<8x8xf32>
    %151 = arith.truncf %150 : vector<8x8xf32> to vector<8x8xbf16>
    %152 = vector.extract_strided_slice %19 {offsets = [24, 0], sizes = [8, 32], strides = [1, 1]} : vector<32x32xbf16> to vector<8x32xbf16>
    %cst_55 = arith.constant dense<0.000000e+00> : vector<8x32xf32>
    %153 = tpu.matmul %151, %152, %cst_55 {dimension_numbers = #tpu.dot_dimension_numbers<[1], [0], [0], [1], [0, 0, 1, 1], [], []>} : vector<8x8xbf16>, vector<8x32xbf16>, vector<8x32xf32> -> vector<8x32xf32>
    %154 = arith.addf %129, %153 : vector<8x32xf32>
    %155 = vector.shape_cast %13 : vector<32xf32> to vector<1x32xf32>
    %156 = vector.broadcast %155 : vector<1x32xf32> to vector<8x32xf32>
    %157 = arith.addf %154, %156 : vector<8x32xf32>
    %158 = arith.addf %157, %1 : vector<8x32xf32>
    %cst_56 = arith.constant dense<0.000000e+00> : vector<8xf32>
    %159 = vector.multi_reduction <add>, %158, %cst_56 [1] : vector<8x32xf32> to vector<8xf32>
    %160 = vector.shape_cast %159 : vector<8xf32> to vector<8x1xf32>
    %cst_57 = arith.constant 3.200000e+01 : f32
    %161 = vector.broadcast %cst_57 : f32 to vector<8x1xf32>
    %162 = arith.divf %160, %161 : vector<8x1xf32>
    %163 = vector.broadcast %162 : vector<8x1xf32> to vector<8x32xf32>
    %164 = arith.subf %158, %163 : vector<8x32xf32>
    %165 = arith.mulf %164, %164 : vector<8x32xf32>
    %cst_58 = arith.constant dense<0.000000e+00> : vector<8xf32>
    %166 = vector.multi_reduction <add>, %165, %cst_58 [1] : vector<8x32xf32> to vector<8xf32>
    %167 = vector.shape_cast %166 : vector<8xf32> to vector<8x1xf32>
    %cst_59 = arith.constant 3.200000e+01 : f32
    %168 = vector.broadcast %cst_59 : f32 to vector<8x1xf32>
    %169 = arith.divf %167, %168 : vector<8x1xf32>
    %170 = vector.broadcast %162 : vector<8x1xf32> to vector<8x32xf32>
    %171 = arith.subf %158, %170 : vector<8x32xf32>
    %cst_60 = arith.constant 9.99999997E-7 : f32
    %172 = vector.broadcast %cst_60 : f32 to vector<8x1xf32>
    %173 = arith.addf %169, %172 : vector<8x1xf32>
    %174 = math.rsqrt %173 : vector<8x1xf32>
    %175 = vector.broadcast %174 : vector<8x1xf32> to vector<8x32xf32>
    %176 = arith.mulf %171, %175 : vector<8x32xf32>
    %177 = vector.shape_cast %7 : vector<32xf32> to vector<1x32xf32>
    %178 = vector.broadcast %177 : vector<1x32xf32> to vector<8x32xf32>
    %179 = arith.mulf %176, %178 : vector<8x32xf32>
    %180 = vector.shape_cast %9 : vector<32xf32> to vector<1x32xf32>
    %181 = vector.broadcast %180 : vector<1x32xf32> to vector<8x32xf32>
    %182 = arith.addf %179, %181 : vector<8x32xf32>
    %183 = arith.truncf %182 : vector<8x32xf32> to vector<8x32xbf16>
    %cst_61 = arith.constant dense<0.000000e+00> : vector<8x64xf32>
    %184 = tpu.matmul %183, %20, %cst_61 {dimension_numbers = #tpu.dot_dimension_numbers<[1], [0], [0], [1], [0, 0, 1, 1], [], []>} : vector<8x32xbf16>, vector<32x64xbf16>, vector<8x64xf32> -> vector<8x64xf32>
    %185 = vector.shape_cast %15 : vector<64xf32> to vector<1x64xf32>
    %186 = vector.broadcast %185 : vector<1x64xf32> to vector<8x64xf32>
    %187 = arith.addf %184, %186 : vector<8x64xf32>
    %cst_62 = arith.constant 5.000000e-01 : f32
    %188 = vector.broadcast %cst_62 : f32 to vector<8x64xf32>
    %189 = arith.mulf %188, %187 : vector<8x64xf32>
    %cst_63 = arith.constant 0.707106769 : f32
    %190 = vector.broadcast %cst_63 : f32 to vector<8x64xf32>
    %191 = arith.mulf %187, %190 : vector<8x64xf32>
    %192 = math.erf %191 : vector<8x64xf32>
    %cst_64 = arith.constant 1.000000e+00 : f32
    %193 = vector.broadcast %cst_64 : f32 to vector<8x64xf32>
    %194 = arith.addf %193, %192 : vector<8x64xf32>
    %195 = arith.mulf %189, %194 : vector<8x64xf32>
    %196 = arith.truncf %195 : vector<8x64xf32> to vector<8x64xbf16>
    %cst_65 = arith.constant dense<0.000000e+00> : vector<8x32xf32>
    %197 = tpu.matmul %196, %21, %cst_65 {dimension_numbers = #tpu.dot_dimension_numbers<[1], [0], [0], [1], [0, 0, 1, 1], [], []>} : vector<8x64xbf16>, vector<64x32xbf16>, vector<8x32xf32> -> vector<8x32xf32>
    %198 = vector.shape_cast %17 : vector<32xf32> to vector<1x32xf32>
    %199 = vector.broadcast %198 : vector<1x32xf32> to vector<8x32xf32>
    %200 = arith.addf %197, %199 : vector<8x32xf32>
    %201 = arith.addf %158, %200 : vector<8x32xf32>
    %c0_66 = arith.constant 0 : index
    %c0_67 = arith.constant 0 : index
    %c0_68 = arith.constant 0 : index
    %202 = vector.load %arg16[%c0_66, %c0_67, %c0_68] : memref<1x8x32xf32, #tpu.memory_space<vmem>>, vector<1x8x32xf32>
    %203 = vector.shape_cast %202 : vector<1x8x32xf32> to vector<8x32xf32>
    %204 = vector.shape_cast %201 : vector<8x32xf32> to vector<1x8x32xf32>
    tpu.vector_store %arg16[%c0_66, %c0_67, %c0_68], %204 {strides = array<i32>} : memref<1x8x32xf32, #tpu.memory_space<vmem>>, vector<1x8x32xf32>,
    return
  }
  func.func @transform_0(%arg0: i32) -> (i32, i32, i32) {
    %c0_i32 = arith.constant 0 : i32
    %c0_i32_0 = arith.constant 0 : i32
    %c0_i32_1 = arith.constant 0 : i32
    return %arg0, %c0_i32, %c0_i32_0 : i32, i32, i32
  }
  func.func @transform_1(%arg0: i32) -> (i32, i32) {
    %c0_i32 = arith.constant 0 : i32
    %c0_i32_0 = arith.constant 0 : i32
    %c0_i32_1 = arith.constant 0 : i32
    return %c0_i32, %c0_i32_0 : i32, i32
  }
  func.func @transform_2(%arg0: i32) -> (i32, i32) {
    %c0_i32 = arith.constant 0 : i32
    %c0_i32_0 = arith.constant 0 : i32
    %c0_i32_1 = arith.constant 0 : i32
    return %c0_i32, %c0_i32_0 : i32, i32
  }
  func.func @transform_3(%arg0: i32) -> (i32, i32) {
    %c0_i32 = arith.constant 0 : i32
    %c0_i32_0 = arith.constant 0 : i32
    %c0_i32_1 = arith.constant 0 : i32
    return %c0_i32, %c0_i32_0 : i32, i32
  }
  func.func @transform_4(%arg0: i32) -> (i32, i32) {
    %c0_i32 = arith.constant 0 : i32
    %c0_i32_0 = arith.constant 0 : i32
    %c0_i32_1 = arith.constant 0 : i32
    return %c0_i32, %c0_i32_0 : i32, i32
  }
  func.func @transform_5(%arg0: i32) -> (i32, i32) {
    %c0_i32 = arith.constant 0 : i32
    %c0_i32_0 = arith.constant 0 : i32
    %c0_i32_1 = arith.constant 0 : i32
    return %c0_i32, %c0_i32_0 : i32, i32
  }
  func.func @transform_6(%arg0: i32) -> (i32, i32) {
    %c0_i32 = arith.constant 0 : i32
    %c0_i32_0 = arith.constant 0 : i32
    %c0_i32_1 = arith.constant 0 : i32
    return %c0_i32, %c0_i32_0 : i32, i32
  }
  func.func @transform_7(%arg0: i32) -> (i32, i32) {
    %c0_i32 = arith.constant 0 : i32
    %c0_i32_0 = arith.constant 0 : i32
    %c0_i32_1 = arith.constant 0 : i32
    return %c0_i32, %c0_i32_0 : i32, i32
  }
  func.func @transform_8(%arg0: i32) -> (i32, i32) {
    %c0_i32 = arith.constant 0 : i32
    %c0_i32_0 = arith.constant 0 : i32
    %c0_i32_1 = arith.constant 0 : i32
    return %c0_i32, %c0_i32_0 : i32, i32
  }
  func.func @transform_9(%arg0: i32) -> (i32, i32) {
    %c0_i32 = arith.constant 0 : i32
    %c0_i32_0 = arith.constant 0 : i32
    %c0_i32_1 = arith.constant 0 : i32
    return %c0_i32, %c0_i32_0 : i32, i32
  }
  func.func @transform_10(%arg0: i32) -> (i32, i32) {
    %c0_i32 = arith.constant 0 : i32
    %c0_i32_0 = arith.constant 0 : i32
    %c0_i32_1 = arith.constant 0 : i32
    return %c0_i32, %c0_i32_0 : i32, i32
  }
  func.func @transform_11(%arg0: i32) -> (i32, i32) {
    %c0_i32 = arith.constant 0 : i32
    %c0_i32_0 = arith.constant 0 : i32
    %c0_i32_1 = arith.constant 0 : i32
    return %c0_i32, %c0_i32_0 : i32, i32
  }
  func.func @transform_12(%arg0: i32) -> (i32, i32) {
    %c0_i32 = arith.constant 0 : i32
    %c0_i32_0 = arith.constant 0 : i32
    %c0_i32_1 = arith.constant 0 : i32
    return %c0_i32, %c0_i32_0 : i32, i32
  }
  func.func @transform_13(%arg0: i32) -> (i32, i32) {
    %c0_i32 = arith.constant 0 : i32
    %c0_i32_0 = arith.constant 0 : i32
    %c0_i32_1 = arith.constant 0 : i32
    return %c0_i32, %c0_i32_0 : i32, i32
  }
  func.func @transform_14(%arg0: i32) -> (i32, i32) {
    %c0_i32 = arith.constant 0 : i32
    %c0_i32_0 = arith.constant 0 : i32
    %c0_i32_1 = arith.constant 0 : i32
    return %c0_i32, %c0_i32_0 : i32, i32
  }
  func.func @transform_15(%arg0: i32) -> (i32, i32, i32) {
    %c0_i32 = arith.constant 0 : i32
    %c0_i32_0 = arith.constant 0 : i32
    %c0_i32_1 = arith.constant 0 : i32
    return %arg0, %c0_i32, %c0_i32_0 : i32, i32, i32
  }
}

</mosaic_0001>

<llo_original>
// kernel: tpu_custom_call.1
$region0: #{tpu_custom_call.1}
  #allocation0 [shape = 'u32[]', space=smem, size = 0x4, offset = 0x4, fixed_abs, tag = 'smem constant byte address 0x4 - core index']
  #allocation1 [shape = 'u32[144,128]{1,0:T(1,128)}', space=vmem, size = 0x12000, scoped, tag = 'internal scratch']
  %s0 = inlined_call_operand.vmem [shape: f32[2,8,32], index: 0, kind: input, shape index: {}]
  %s1 = inlined_call_operand.hbm [shape: f32[1,32], index: 1, kind: input, shape index: {}]
  %s2 = inlined_call_operand.hbm [shape: f32[1,32], index: 2, kind: input, shape index: {}]
  %s3 = inlined_call_operand.vmem [shape: bf16[32,96], index: 3, kind: input, shape index: {}]
  %s4 = inlined_call_operand.hbm [shape: f32[1,96], index: 4, kind: input, shape index: {}]
  %s5 = inlined_call_operand.vmem [shape: bf16[32,32], index: 5, kind: input, shape index: {}]
  %s6 = inlined_call_operand.hbm [shape: f32[1,32], index: 6, kind: input, shape index: {}]
  %s7 = inlined_call_operand.hbm [shape: f32[1,32], index: 7, kind: input, shape index: {}]
  %s8 = inlined_call_operand.hbm [shape: f32[1,32], index: 8, kind: input, shape index: {}]
  %s9 = inlined_call_operand.vmem [shape: bf16[32,64], index: 9, kind: input, shape index: {}]
  %s10 = inlined_call_operand.vmem [shape: f32[1,64], index: 10, kind: input, shape index: {}]
  %s11 = inlined_call_operand.vmem [shape: bf16[64,32], index: 11, kind: input, shape index: {}]
  %s12 = inlined_call_operand.vmem [shape: f32[1,32], index: 12, kind: input, shape index: {}]
  %s13 = inlined_call_operand.vmem [shape: f32[1,32], index: 13, kind: input, shape index: {}]
  %s14 = inlined_call_operand.vmem [shape: f32[1,32], index: 14, kind: input, shape index: {}]
  %s15 = inlined_call_operand.hbm [shape: f32[2,8,32], index: 15, kind: output, shape index: {}]
  %s16 = sld [smem:[#allocation0]]
  $region117: #{tpu_custom_call.1} parent=0
    _
  %s18 = ssub.s32 1, %s16
  %s19 = scalar_select 0, %s18, %s16
  $region1: #{tpu_custom_call.1} parent=0
    #allocation2 [shape = 'u8[512]{0}', space=vmem, size = 0x400, scoped, tag = 'input window, operand 1, single buffered']
    #allocation3 [shape = 's32[2]{0}', space=sflag, size = 0x8, scoped, tag = 'scoped memory for tpu_custom_call.1']
    #allocation4 [shape = 's32[2]{0}', space=sflag, size = 0x8, scoped, tag = 'scoped memory for tpu_custom_call.1']
    #allocation5 [shape = 'u8[512]{0}', space=vmem, size = 0x400, scoped, tag = 'input window, operand 2, single buffered']
    #allocation6 [shape = 's32[1]{0}', space=sflag, size = 0x4, scoped, tag = 'scoped memory for tpu_custom_call.1']
    #allocation7 [shape = 'u8[512]{0}', space=vmem, size = 0x400, scoped, tag = 'input window, operand 4, single buffered']
    #allocation8 [shape = 'u8[512]{0}', space=vmem, size = 0x400, scoped, tag = 'input window, operand 6, single buffered']
    #allocation9 [shape = 's32[1]{0}', space=sflag, size = 0x4, scoped, tag = 'scoped memory for tpu_custom_call.1']
    #allocation10 [shape = 'u8[512]{0}', space=vmem, size = 0x400, scoped, tag = 'input window, operand 7, single buffered']
    #allocation11 [shape = 'u8[512]{0}', space=vmem, size = 0x400, scoped, tag = 'input window, operand 8, single buffered']
    #allocation12 [shape = 's32[1]{0}', space=sflag, size = 0x4, scoped, tag = 'scoped memory for tpu_custom_call.1']
    #allocation13 [shape = 'u8[8192]{0}', space=vmem, size = 0x2000, scoped, tag = 'output window, operand 0']
    %20 = vsyncpa [#allocation3], 0
    %21 = vsyncpa [#allocation6], 0
    %22 = vsyncpa [#allocation9], 0
    %23 = vsyncpa [#allocation12], 0
    %24 = vsyncpa [#allocation4], 0
    %s25 = scalar_lea.sflag [#allocation4], 1
    %26 = vsyncpa %s25, 0
    loop: start=0, step=1, limit=4
    $region2: #{tpu_custom_call.1} parent=1 // loop_pre_header
      _
    $region3: #{tpu_custom_call.1} parent=1 // loop_header
      %s28 = sphi 0, %s32
      %p29 = scmp.ge.s32.totalorder %s28, 4
      %s38 = sphi 0, %s40
      %s41 = sphi 0, %s38
      %s42 = sphi 0, %s41
      %s58 = sphi 0, %s42
      %s62 = sphi 0, %s62
      %s64 = sphi 0, %s62
      %s65 = sphi 0, %s64
      %s79 = sphi 0, %s65
      %s83 = sphi 0, %s83
      %s85 = sphi 0, %s83
      %s86 = sphi 0, %s85
      %s100 = sphi 0, %s86
      %s104 = sphi 0, %s104
      %s106 = sphi 0, %s104
      %s107 = sphi 0, %s106
      %s121 = sphi 0, %s107
      %s125 = sphi 0, %s125
      %s127 = sphi 0, %s125
      %s128 = sphi 0, %s127
      %s142 = sphi 0, %s128
      %s146 = sphi 0, %s146
      %s148 = sphi 0, %s146
      %s149 = sphi 0, %s148
      %s163 = sphi 0, %s149
      %s167 = sphi 0, %s167
      %s169 = sphi 0, %s167
      %s170 = sphi 0, %s169
      %s184 = sphi 0, %s170
      %s188 = sphi 0, %s188
      %s190 = sphi 0, %s188
      %s191 = sphi 0, %s190
      %s205 = sphi 0, %s191
      %s209 = sphi 0, %s209
      %s211 = sphi 0, %s209
      %s212 = sphi 0, %s211
      %s226 = sphi 0, %s212
      %s230 = sphi 0, %s230
      %s232 = sphi 0, %s230
      %s233 = sphi 0, %s232
      %s247 = sphi 0, %s233
      %s251 = sphi 0, %s251
      %s253 = sphi 0, %s251
      %s254 = sphi 0, %s253
      %s268 = sphi 0, %s254
      %s272 = sphi 0, %s272
      %s274 = sphi 0, %s272
      %s275 = sphi 0, %s274
      %s289 = sphi 0, %s275
      %s293 = sphi 0, %s293
      %s295 = sphi 0, %s293
      %s296 = sphi 0, %s295
      %s310 = sphi 0, %s296
      %s314 = sphi 0, %s314
      %s316 = sphi 0, %s314
      %s317 = sphi 0, %s316
      %s331 = sphi 0, %s317
      %s335 = sphi 0, %s335
      %s337 = sphi 0, %s335
      %s338 = sphi 0, %s337
      %s352 = sphi 0, %s338
      %s358 = sphi 0, %s360
      %s361 = sphi 0, %s358
      %s362 = sphi 0, %s361
      %s378 = sphi 0, %s362
    $region4: #{tpu_custom_call.1} parent=1 // loop_header_branch
      %31 = sbr.rel (%p29) target = $region8
    $region5: #{tpu_custom_call.1} parent=1 // loop_body
      %s33 = ssub.s32 %s28, 1
      %s34 = ssub.s32 %s28, 2
      %s35 = sadd.s32 %s28, 1
      %s36 = ssub.s32 %s28, %s35
      %p37 = scmp.eq.s32.totalorder %s36, 0
      %s39 = sadd.s32 %s38, 1
      %s40 = scalar_select %p37, %s38, %s39
      %p43 = pneg %p37
      %p44 = scmp.eq.s32.totalorder %s28, 1
      %p45 = por %p43, %p44
      %p46 = scmp.ne.s32.totalorder %s38, %s41
      %p47 = scmp.eq.s32.totalorder %s28, 0
      %p48 = por %p46, %p47
      %p49 = scmp.ne.s32.totalorder %s38, %s41
      %p50 = scmp.eq.s32.totalorder %s33, 1
      %p51 = por %p49, %p50
      %p52 = scmp.ne.s32.totalorder %s41, %s42
      %p53 = scmp.eq.s32.totalorder %s33, 0
      %p54 = por %p52, %p53
      %p55 = scmp.ne.s32.totalorder %s41, %s42
      %p56 = scmp.eq.s32.totalorder %s34, 1
      %p57 = por %p55, %p56
      %p59 = scmp.ne.s32.totalorder %s42, %s58
      %p60 = scmp.eq.s32.totalorder %s34, 0
      %p61 = por %p59, %p60
      %s63 = sadd.s32 %s62, 1
      %p66 = scmp.eq.s32.totalorder %s28, 1
      %p67 = scmp.ne.s32.totalorder %s62, %s64
      %p68 = scmp.eq.s32.totalorder %s28, 0
      %p69 = por %p67, %p68
      %p70 = scmp.ne.s32.totalorder %s62, %s64
      %p71 = scmp.eq.s32.totalorder %s33, 1
      %p72 = por %p70, %p71
      %p73 = scmp.ne.s32.totalorder %s64, %s65
      %p74 = scmp.eq.s32.totalorder %s33, 0
      %p75 = por %p73, %p74
      %p76 = scmp.ne.s32.totalorder %s64, %s65
      %p77 = scmp.eq.s32.totalorder %s34, 1
      %p78 = por %p76, %p77
      %p80 = scmp.ne.s32.totalorder %s65, %s79
      %p81 = scmp.eq.s32.totalorder %s34, 0
      %p82 = por %p80, %p81
      %s84 = sadd.s32 %s83, 1
      %p87 = scmp.eq.s32.totalorder %s28, 1
      %p88 = scmp.ne.s32.totalorder %s83, %s85
      %p89 = scmp.eq.s32.totalorder %s28, 0
      %p90 = por %p88, %p89
      %p91 = scmp.ne.s32.totalorder %s83, %s85
      %p92 = scmp.eq.s32.totalorder %s33, 1
      %p93 = por %p91, %p92
      %p94 = scmp.ne.s32.totalorder %s85, %s86
      %p95 = scmp.eq.s32.totalorder %s33, 0
      %p96 = por %p94, %p95
      %p97 = scmp.ne.s32.totalorder %s85, %s86
      %p98 = scmp.eq.s32.totalorder %s34, 1
      %p99 = por %p97, %p98
      %p101 = scmp.ne.s32.totalorder %s86, %s100
      %p102 = scmp.eq.s32.totalorder %s34, 0
      %p103 = por %p101, %p102
      %s105 = sadd.s32 %s104, 1
      %p108 = scmp.eq.s32.totalorder %s28, 1
      %p109 = scmp.ne.s32.totalorder %s104, %s106
      %p110 = scmp.eq.s32.totalorder %s28, 0
      %p111 = por %p109, %p110
      %p112 = scmp.ne.s32.totalorder %s104, %s106
      %p113 = scmp.eq.s32.totalorder %s33, 1
      %p114 = por %p112, %p113
      %p115 = scmp.ne.s32.totalorder %s106, %s107
      %p116 = scmp.eq.s32.totalorder %s33, 0
      %p117 = por %p115, %p116
      %p118 = scmp.ne.s32.totalorder %s106, %s107
      %p119 = scmp.eq.s32.totalorder %s34, 1
      %p120 = por %p118, %p119
      %p122 = scmp.ne.s32.totalorder %s107, %s121
      %p123 = scmp.eq.s32.totalorder %s34, 0
      %p124 = por %p122, %p123
      %s126 = sadd.s32 %s125, 1
      %p129 = scmp.eq.s32.totalorder %s28, 1
      %p130 = scmp.ne.s32.totalorder %s125, %s127
      %p131 = scmp.eq.s32.totalorder %s28, 0
      %p132 = por %p130, %p131
      %p133 = scmp.ne.s32.totalorder %s125, %s127
      %p134 = scmp.eq.s32.totalorder %s33, 1
      %p135 = por %p133, %p134
      %p136 = scmp.ne.s32.totalorder %s127, %s128
      %p137 = scmp.eq.s32.totalorder %s33, 0
      %p138 = por %p136, %p137
      %p139 = scmp.ne.s32.totalorder %s127, %s128
      %p140 = scmp.eq.s32.totalorder %s34, 1
      %p141 = por %p139, %p140
      %p143 = scmp.ne.s32.totalorder %s128, %s142
      %p144 = scmp.eq.s32.totalorder %s34, 0
      %p145 = por %p143, %p144
      %s147 = sadd.s32 %s146, 1
      %p150 = scmp.eq.s32.totalorder %s28, 1
      %p151 = scmp.ne.s32.totalorder %s146, %s148
      %p152 = scmp.eq.s32.totalorder %s28, 0
      %p153 = por %p151, %p152
      %p154 = scmp.ne.s32.totalorder %s146, %s148
      %p155 = scmp.eq.s32.totalorder %s33, 1
      %p156 = por %p154, %p155
      %p157 = scmp.ne.s32.totalorder %s148, %s149
      %p158 = scmp.eq.s32.totalorder %s33, 0
      %p159 = por %p157, %p158
      %p160 = scmp.ne.s32.totalorder %s148, %s149
      %p161 = scmp.eq.s32.totalorder %s34, 1
      %p162 = por %p160, %p161
      %p164 = scmp.ne.s32.totalorder %s149, %s163
      %p165 = scmp.eq.s32.totalorder %s34, 0
      %p166 = por %p164, %p165
      %s168 = sadd.s32 %s167, 1
      %p171 = scmp.eq.s32.totalorder %s28, 1
      %p172 = scmp.ne.s32.totalorder %s167, %s169
      %p173 = scmp.eq.s32.totalorder %s28, 0
      %p174 = por %p172, %p173
      %p175 = scmp.ne.s32.totalorder %s167, %s169
      %p176 = scmp.eq.s32.totalorder %s33, 1
      %p177 = por %p175, %p176
      %p178 = scmp.ne.s32.totalorder %s169, %s170
      %p179 = scmp.eq.s32.totalorder %s33, 0
      %p180 = por %p178, %p179
      %p181 = scmp.ne.s32.totalorder %s169, %s170
      %p182 = scmp.eq.s32.totalorder %s34, 1
      %p183 = por %p181, %p182
      %p185 = scmp.ne.s32.totalorder %s170, %s184
      %p186 = scmp.eq.s32.totalorder %s34, 0
      %p187 = por %p185, %p186
      %s189 = sadd.s32 %s188, 1
      %p192 = scmp.eq.s32.totalorder %s28, 1
      %p193 = scmp.ne.s32.totalorder %s188, %s190
      %p194 = scmp.eq.s32.totalorder %s28, 0
      %p195 = por %p193, %p194
      %p196 = scmp.ne.s32.totalorder %s188, %s190
      %p197 = scmp.eq.s32.totalorder %s33, 1
      %p198 = por %p196, %p197
      %p199 = scmp.ne.s32.totalorder %s190, %s191
      %p200 = scmp.eq.s32.totalorder %s33, 0
      %p201 = por %p199, %p200
      %p202 = scmp.ne.s32.totalorder %s190, %s191
      %p203 = scmp.eq.s32.totalorder %s34, 1
      %p204 = por %p202, %p203
      %p206 = scmp.ne.s32.totalorder %s191, %s205
      %p207 = scmp.eq.s32.totalorder %s34, 0
      %p208 = por %p206, %p207
      %s210 = sadd.s32 %s209, 1
      %p213 = scmp.eq.s32.totalorder %s28, 1
      %p214 = scmp.ne.s32.totalorder %s209, %s211
      %p215 = scmp.eq.s32.totalorder %s28, 0
      %p216 = por %p214, %p215
      %p217 = scmp.ne.s32.totalorder %s209, %s211
      %p218 = scmp.eq.s32.totalorder %s33, 1
      %p219 = por %p217, %p218
      %p220 = scmp.ne.s32.totalorder %s211, %s212
      %p221 = scmp.eq.s32.totalorder %s33, 0
      %p222 = por %p220, %p221
      %p223 = scmp.ne.s32.totalorder %s211, %s212
      %p224 = scmp.eq.s32.totalorder %s34, 1
      %p225 = por %p223, %p224
      %p227 = scmp.ne.s32.totalorder %s212, %s226
      %p228 = scmp.eq.s32.totalorder %s34, 0
      %p229 = por %p227, %p228
      %s231 = sadd.s32 %s230, 1
      %p234 = scmp.eq.s32.totalorder %s28, 1
      %p235 = scmp.ne.s32.totalorder %s230, %s232
      %p236 = scmp.eq.s32.totalorder %s28, 0
      %p237 = por %p235, %p236
      %p238 = scmp.ne.s32.totalorder %s230, %s232
      %p239 = scmp.eq.s32.totalorder %s33, 1
      %p240 = por %p238, %p239
      %p241 = scmp.ne.s32.totalorder %s232, %s233
      %p242 = scmp.eq.s32.totalorder %s33, 0
      %p243 = por %p241, %p242
      %p244 = scmp.ne.s32.totalorder %s232, %s233
      %p245 = scmp.eq.s32.totalorder %s34, 1
      %p246 = por %p244, %p245
      %p248 = scmp.ne.s32.totalorder %s233, %s247
      %p249 = scmp.eq.s32.totalorder %s34, 0
      %p250 = por %p248, %p249
      %s252 = sadd.s32 %s251, 1
      %p255 = scmp.eq.s32.totalorder %s28, 1
      %p256 = scmp.ne.s32.totalorder %s251, %s253
      %p257 = scmp.eq.s32.totalorder %s28, 0
      %p258 = por %p256, %p257
      %p259 = scmp.ne.s32.totalorder %s251, %s253
      %p260 = scmp.eq.s32.totalorder %s33, 1
      %p261 = por %p259, %p260
      %p262 = scmp.ne.s32.totalorder %s253, %s254
      %p263 = scmp.eq.s32.totalorder %s33, 0
      %p264 = por %p262, %p263
      %p265 = scmp.ne.s32.totalorder %s253, %s254
      %p266 = scmp.eq.s32.totalorder %s34, 1
      %p267 = por %p265, %p266
      %p269 = scmp.ne.s32.totalorder %s254, %s268
      %p270 = scmp.eq.s32.totalorder %s34, 0
      %p271 = por %p269, %p270
      %s273 = sadd.s32 %s272, 1
      %p276 = scmp.eq.s32.totalorder %s28, 1
      %p277 = scmp.ne.s32.totalorder %s272, %s274
      %p278 = scmp.eq.s32.totalorder %s28, 0
      %p279 = por %p277, %p278
      %p280 = scmp.ne.s32.totalorder %s272, %s274
      %p281 = scmp.eq.s32.totalorder %s33, 1
      %p282 = por %p280, %p281
      %p283 = scmp.ne.s32.totalorder %s274, %s275
      %p284 = scmp.eq.s32.totalorder %s33, 0
      %p285 = por %p283, %p284
      %p286 = scmp.ne.s32.totalorder %s274, %s275
      %p287 = scmp.eq.s32.totalorder %s34, 1
      %p288 = por %p286, %p287
      %p290 = scmp.ne.s32.totalorder %s275, %s289
      %p291 = scmp.eq.s32.totalorder %s34, 0
      %p292 = por %p290, %p291
      %s294 = sadd.s32 %s293, 1
      %p297 = scmp.eq.s32.totalorder %s28, 1
      %p298 = scmp.ne.s32.totalorder %s293, %s295
      %p299 = scmp.eq.s32.totalorder %s28, 0
      %p300 = por %p298, %p299
      %p301 = scmp.ne.s32.totalorder %s293, %s295
      %p302 = scmp.eq.s32.totalorder %s33, 1
      %p303 = por %p301, %p302
      %p304 = scmp.ne.s32.totalorder %s295, %s296
      %p305 = scmp.eq.s32.totalorder %s33, 0
      %p306 = por %p304, %p305
      %p307 = scmp.ne.s32.totalorder %s295, %s296
      %p308 = scmp.eq.s32.totalorder %s34, 1
      %p309 = por %p307, %p308
      %p311 = scmp.ne.s32.totalorder %s296, %s310
      %p312 = scmp.eq.s32.totalorder %s34, 0
      %p313 = por %p311, %p312
      %s315 = sadd.s32 %s314, 1
      %p318 = scmp.eq.s32.totalorder %s28, 1
      %p319 = scmp.ne.s32.totalorder %s314, %s316
      %p320 = scmp.eq.s32.totalorder %s28, 0
      %p321 = por %p319, %p320
      %p322 = scmp.ne.s32.totalorder %s314, %s316
      %p323 = scmp.eq.s32.totalorder %s33, 1
      %p324 = por %p322, %p323
      %p325 = scmp.ne.s32.totalorder %s316, %s317
      %p326 = scmp.eq.s32.totalorder %s33, 0
      %p327 = por %p325, %p326
      %p328 = scmp.ne.s32.totalorder %s316, %s317
      %p329 = scmp.eq.s32.totalorder %s34, 1
      %p330 = por %p328, %p329
      %p332 = scmp.ne.s32.totalorder %s317, %s331
      %p333 = scmp.eq.s32.totalorder %s34, 0
      %p334 = por %p332, %p333
      %s336 = sadd.s32 %s335, 1
      %p339 = scmp.eq.s32.totalorder %s28, 1
      %p340 = scmp.ne.s32.totalorder %s335, %s337
      %p341 = scmp.eq.s32.totalorder %s28, 0
      %p342 = por %p340, %p341
      %p343 = scmp.ne.s32.totalorder %s335, %s337
      %p344 = scmp.eq.s32.totalorder %s33, 1
      %p345 = por %p343, %p344
      %p346 = scmp.ne.s32.totalorder %s337, %s338
      %p347 = scmp.eq.s32.totalorder %s33, 0
      %p348 = por %p346, %p347
      %p349 = scmp.ne.s32.totalorder %s337, %s338
      %p350 = scmp.eq.s32.totalorder %s34, 1
      %p351 = por %p349, %p350
      %p353 = scmp.ne.s32.totalorder %s338, %s352
      %p354 = scmp.eq.s32.totalorder %s34, 0
      %p355 = por %p353, %p354
      %s356 = ssub.s32 %s28, %s35
      %p357 = scmp.eq.s32.totalorder %s356, 0
      %s359 = sadd.s32 %s358, 1
      %s360 = scalar_select %p357, %s358, %s359
      %p363 = pneg %p357
      %p364 = scmp.eq.s32.totalorder %s28, 1
      %p365 = por %p363, %p364
      %p366 = scmp.ne.s32.totalorder %s358, %s361
      %p367 = scmp.eq.s32.totalorder %s28, 0
      %p368 = por %p366, %p367
      %p369 = scmp.ne.s32.totalorder %s358, %s361
      %p370 = scmp.eq.s32.totalorder %s33, 1
      %p371 = por %p369, %p370
      %p372 = scmp.ne.s32.totalorder %s361, %s362
      %p373 = scmp.eq.s32.totalorder %s33, 0
      %p374 = por %p372, %p373
      %p375 = scmp.ne.s32.totalorder %s361, %s362
      %p376 = scmp.eq.s32.totalorder %s34, 1
      %p377 = por %p375, %p376
      %p379 = scmp.ne.s32.totalorder %s362, %s378
      %p380 = scmp.eq.s32.totalorder %s34, 0
      %p381 = por %p379, %p380
      %p382 = scmp.le.s32.totalorder 1, %s28
      %p383 = scmp.lt.s32.totalorder %s28, 3
      %p384 = pnand %p382, %p383
      %p385 = pneg %p384
      // Predicated region
      $region9: #{tpu_custom_call.1} parent=5 // pred_check
        _
      $region10: #{tpu_custom_call.1} parent=5 // pred_check_branch
        %387 = sbr.rel (%p384) target = $region12
      $region11: #{tpu_custom_call.1} parent=5 // pred_region
        %s388 = ssub.s32 %s28, 1
        // Predicated region
        $region13: #{tpu_custom_call.1} parent=11 // pred_check
          %p389 = pneg %p75
        $region14: #{tpu_custom_call.1} parent=11 // pred_check_branch
          %391 = sbr.rel (%p389) target = $region16
        $region15: #{tpu_custom_call.1} parent=11 // pred_region
          %s393 = ssub.s32 16, 16
          %394 = vsyncadd [#allocation3], %s393
          %s396 = sshll.u32 [#allocation2], 4
          %s397 = int_to_ptr.vmem [resolvable:$true] %s396
          %399 = dma.hbm_to_vmem [thread:$0]  %s1, 16, %s397, [#allocation3]
        $region16: #{tpu_custom_call.1} parent=11 // pred_fallthru
          _
        // Predicated region
        $region17: #{tpu_custom_call.1} parent=11 // pred_check
          %p400 = pneg %p96
        $region18: #{tpu_custom_call.1} parent=11 // pred_check_branch
          %402 = sbr.rel (%p400) target = $region20
        $region19: #{tpu_custom_call.1} parent=11 // pred_region
          %s404 = ssub.s32 16, 16
          %405 = vsyncadd [#allocation6], %s404
          %s407 = sshll.u32 [#allocation5], 4
          %s408 = int_to_ptr.vmem [resolvable:$true] %s407
          %410 = dma.hbm_to_vmem [thread:$0]  %s2, 16, %s408, [#allocation6]
        $region20: #{tpu_custom_call.1} parent=11 // pred_fallthru
          _
        // Predicated region
        $region21: #{tpu_custom_call.1} parent=11 // pred_check
          %p411 = pneg %p117
        $region22: #{tpu_custom_call.1} parent=11 // pred_check_branch
          %413 = sbr.rel (%p411) target = $region24
        $region23: #{tpu_custom_call.1} parent=11 // pred_region
          _
        $region24: #{tpu_custom_call.1} parent=11 // pred_fallthru
          _
        // Predicated region
        $region25: #{tpu_custom_call.1} parent=11 // pred_check
          %p414 = pneg %p138
        $region26: #{tpu_custom_call.1} parent=11 // pred_check_branch
          %416 = sbr.rel (%p414) target = $region28
        $region27: #{tpu_custom_call.1} parent=11 // pred_region
          %s418 = ssub.s32 16, 16
          %419 = vsyncadd [#allocation6], %s418
          %s421 = sshll.u32 [#allocation7], 4
          %s422 = int_to_ptr.vmem [resolvable:$true] %s421
          %424 = dma.hbm_to_vmem [thread:$0]  %s4, 16, %s422, [#allocation6]
        $region28: #{tpu_custom_call.1} parent=11 // pred_fallthru
          _
        // Predicated region
        $region29: #{tpu_custom_call.1} parent=11 // pred_check
          %p425 = pneg %p159
        $region30: #{tpu_custom_call.1} parent=11 // pred_check_branch
          %427 = sbr.rel (%p425) target = $region32
        $region31: #{tpu_custom_call.1} parent=11 // pred_region
          _
        $region32: #{tpu_custom_call.1} parent=11 // pred_fallthru
          _
        // Predicated region
        $region33: #{tpu_custom_call.1} parent=11 // pred_check
          %p428 = pneg %p180
        $region34: #{tpu_custom_call.1} parent=11 // pred_check_branch
          %430 = sbr.rel (%p428) target = $region36
        $region35: #{tpu_custom_call.1} parent=11 // pred_region
          %s432 = ssub.s32 16, 16
          %433 = vsyncadd [#allocation9], %s432
          %s435 = sshll.u32 [#allocation8], 4
          %s436 = int_to_ptr.vmem [resolvable:$true] %s435
          %438 = dma.hbm_to_vmem [thread:$0]  %s6, 16, %s436, [#allocation9]
        $region36: #{tpu_custom_call.1} parent=11 // pred_fallthru
          _
        // Predicated region
        $region37: #{tpu_custom_call.1} parent=11 // pred_check
          %p439 = pneg %p201
        $region38: #{tpu_custom_call.1} parent=11 // pred_check_branch
          %441 = sbr.rel (%p439) target = $region40
        $region39: #{tpu_custom_call.1} parent=11 // pred_region
          %s443 = ssub.s32 16, 16
          %444 = vsyncadd [#allocation9], %s443
          %s446 = sshll.u32 [#allocation10], 4
          %s447 = int_to_ptr.vmem [resolvable:$true] %s446
          %449 = dma.hbm_to_vmem [thread:$0]  %s7, 16, %s447, [#allocation9]
        $region40: #{tpu_custom_call.1} parent=11 // pred_fallthru
          _
        // Predicated region
        $region41: #{tpu_custom_call.1} parent=11 // pred_check
          %p450 = pneg %p222
        $region42: #{tpu_custom_call.1} parent=11 // pred_check_branch
          %452 = sbr.rel (%p450) target = $region44
        $region43: #{tpu_custom_call.1} parent=11 // pred_region
          %s454 = ssub.s32 16, 16
          %455 = vsyncadd [#allocation12], %s454
          %s457 = sshll.u32 [#allocation11], 4
          %s458 = int_to_ptr.vmem [resolvable:$true] %s457
          %460 = dma.hbm_to_vmem [thread:$0]  %s8, 16, %s458, [#allocation12]
        $region44: #{tpu_custom_call.1} parent=11 // pred_fallthru
          _
        // Predicated region
        $region45: #{tpu_custom_call.1} parent=11 // pred_check
          %p461 = pneg %p243
        $region46: #{tpu_custom_call.1} parent=11 // pred_check_branch
          %463 = sbr.rel (%p461) target = $region48
        $region47: #{tpu_custom_call.1} parent=11 // pred_region
          _
        $region48: #{tpu_custom_call.1} parent=11 // pred_fallthru
          _
        // Predicated region
        $region49: #{tpu_custom_call.1} parent=11 // pred_check
          %p464 = pneg %p264
        $region50: #{tpu_custom_call.1} parent=11 // pred_check_branch
          %466 = sbr.rel (%p464) target = $region52
        $region51: #{tpu_custom_call.1} parent=11 // pred_region
          _
        $region52: #{tpu_custom_call.1} parent=11 // pred_fallthru
          _
        // Predicated region
        $region53: #{tpu_custom_call.1} parent=11 // pred_check
          %p467 = pneg %p285
        $region54: #{tpu_custom_call.1} parent=11 // pred_check_branch
          %469 = sbr.rel (%p467) target = $region56
        $region55: #{tpu_custom_call.1} parent=11 // pred_region
          _
        $region56: #{tpu_custom_call.1} parent=11 // pred_fallthru
          _
        // Predicated region
        $region57: #{tpu_custom_call.1} parent=11 // pred_check
          %p470 = pneg %p306
        $region58: #{tpu_custom_call.1} parent=11 // pred_check_branch
          %472 = sbr.rel (%p470) target = $region60
        $region59: #{tpu_custom_call.1} parent=11 // pred_region
          _
        $region60: #{tpu_custom_call.1} parent=11 // pred_fallthru
          _
        // Predicated region
        $region61: #{tpu_custom_call.1} parent=11 // pred_check
          %p473 = pneg %p327
        $region62: #{tpu_custom_call.1} parent=11 // pred_check_branch
          %475 = sbr.rel (%p473) target = $region64
        $region63: #{tpu_custom_call.1} parent=11 // pred_region
          _
        $region64: #{tpu_custom_call.1} parent=11 // pred_fallthru
          _
        // Predicated region
        $region65: #{tpu_custom_call.1} parent=11 // pred_check
          %p476 = pneg %p348
        $region66: #{tpu_custom_call.1} parent=11 // pred_check_branch
          %478 = sbr.rel (%p476) target = $region68
        $region67: #{tpu_custom_call.1} parent=11 // pred_region
          _
        $region68: #{tpu_custom_call.1} parent=11 // pred_fallthru
          _
      $region12: #{tpu_custom_call.1} parent=5 // pred_fallthru
        _
      %p479 = scmp.lt.s32.totalorder %s28, 2
      // Predicated region
      $region69: #{tpu_custom_call.1} parent=5 // pred_check
        %p480 = pneg %p479
      $region70: #{tpu_custom_call.1} parent=5 // pred_check_branch
        %482 = sbr.rel (%p480) target = $region72
      $region71: #{tpu_custom_call.1} parent=5 // pred_region
        // Predicated region
        $region73: #{tpu_custom_call.1} parent=71 // pred_check
          %p483 = pneg %p48
        $region74: #{tpu_custom_call.1} parent=71 // pred_check_branch
          %485 = sbr.rel (%p483) target = $region76
        $region75: #{tpu_custom_call.1} parent=71 // pred_region
          %p486 = scmp.lt.s32.totalorder %s28, 1
          %s487 = scalar_select %p486, %s28, 1
          %s488 = smul.addr %s487, 8
          %s489 = scalar_lea.vmem %s0, %s488
        $region76: #{tpu_custom_call.1} parent=71 // pred_fallthru
          _
      $region72: #{tpu_custom_call.1} parent=5 // pred_fallthru
        _
      %p490 = scmp.le.s32.totalorder 1, %s28
      %p491 = scmp.lt.s32.totalorder %s28, 3
      %p492 = pnand %p490, %p491
      %p493 = pneg %p492
      // Predicated region
      $region77: #{tpu_custom_call.1} parent=5 // pred_check
        _
      $region78: #{tpu_custom_call.1} parent=5 // pred_check_branch
        %495 = sbr.rel (%p492) target = $region80
      $region79: #{tpu_custom_call.1} parent=5 // pred_region
        %s496 = ssub.s32 %s28, 1
        // Predicated region
        $region81: #{tpu_custom_call.1} parent=79 // pred_check
          %p497 = pneg %p75
        $region82: #{tpu_custom_call.1} parent=79 // pred_check_branch
          %499 = sbr.rel (%p497) target = $region84
        $region83: #{tpu_custom_call.1} parent=79 // pred_region
          %500 = dma.done [#allocation3], 16
        $region84: #{tpu_custom_call.1} parent=79 // pred_fallthru
          _
        // Predicated region
        $region85: #{tpu_custom_call.1} parent=79 // pred_check
          %p501 = pneg %p96
        $region86: #{tpu_custom_call.1} parent=79 // pred_check_branch
          %503 = sbr.rel (%p501) target = $region88
        $region87: #{tpu_custom_call.1} parent=79 // pred_region
          %504 = dma.done [#allocation6], 16
        $region88: #{tpu_custom_call.1} parent=79 // pred_fallthru
          _
        // Predicated region
        $region89: #{tpu_custom_call.1} parent=79 // pred_check
          %p505 = pneg %p138
        $region90: #{tpu_custom_call.1} parent=79 // pred_check_branch
          %507 = sbr.rel (%p505) target = $region92
        $region91: #{tpu_custom_call.1} parent=79 // pred_region
          %508 = dma.done [#allocation6], 16
        $region92: #{tpu_custom_call.1} parent=79 // pred_fallthru
          _
        // Predicated region
        $region93: #{tpu_custom_call.1} parent=79 // pred_check
          %p509 = pneg %p180
        $region94: #{tpu_custom_call.1} parent=79 // pred_check_branch
          %511 = sbr.rel (%p509) target = $region96
        $region95: #{tpu_custom_call.1} parent=79 // pred_region
          %512 = dma.done [#allocation9], 16
        $region96: #{tpu_custom_call.1} parent=79 // pred_fallthru
          _
        // Predicated region
        $region97: #{tpu_custom_call.1} parent=79 // pred_check
          %p513 = pneg %p201
        $region98: #{tpu_custom_call.1} parent=79 // pred_check_branch
          %515 = sbr.rel (%p513) target = $region100
        $region99: #{tpu_custom_call.1} parent=79 // pred_region
          %516 = dma.done [#allocation9], 16
        $region100: #{tpu_custom_call.1} parent=79 // pred_fallthru
          _
        // Predicated region
        $region101: #{tpu_custom_call.1} parent=79 // pred_check
          %p517 = pneg %p222
        $region102: #{tpu_custom_call.1} parent=79 // pred_check_branch
          %519 = sbr.rel (%p517) target = $region104
        $region103: #{tpu_custom_call.1} parent=79 // pred_region
          %520 = dma.done [#allocation12], 16
        $region104: #{tpu_custom_call.1} parent=79 // pred_fallthru
          _
        %p521 = scmp.lt.s32.totalorder %s33, 1
        %s522 = scalar_select %p521, %s33, 1
        %s523 = smul.addr %s522, 8
        %s524 = scalar_lea.vmem %s0, %s523
        %p525 = pneg %p54
        %p526 = pneg %p51
        %p527 = pneg %p75
        %p528 = pneg %p72
        %p529 = pneg %p96
        %p530 = pneg %p93
        %p531 = pneg %p117
        %p532 = pneg %p114
        %p533 = pneg %p138
        %p534 = pneg %p135
        %p535 = pneg %p159
        %p536 = pneg %p156
        %p537 = pneg %p180
        %p538 = pneg %p177
        %p539 = pneg %p201
        %p540 = pneg %p198
        %p541 = pneg %p222
        %p542 = pneg %p219
        %p543 = pneg %p243
        %p544 = pneg %p240
        %p545 = pneg %p264
        %p546 = pneg %p261
        %p547 = pneg %p285
        %p548 = pneg %p282
        %p549 = pneg %p306
        %p550 = pneg %p303
        %p551 = pneg %p327
        %p552 = pneg %p324
        %p553 = pneg %p348
        %p554 = pneg %p345
        %p555 = pneg %p374
        %p556 = pneg %p371
        %s557 = sand.u32 %s361, 1
        %s558 = scalar_lea.sflag [#allocation4], %s557
        %s559 = sand.u32 %s361, 1
        %s560 = smul.addr %s559, 8
        %s561 = scalar_lea.vmem [#allocation13], %s560
        %p562 = scmp.lt.s32.totalorder %s33, 1
        %s563 = scalar_select %p562, %s33, 1
        %s564 = smul.addr %s563, 8
        %s565 = scalar_lea.vmem %s0, %s564
        %v567 = vld [vmem:[%s565] sm:$0xff]
        %v568 = vld [vmem:[#allocation2] sm:$0x1]
        %v569 = vld [vmem:[#allocation5] sm:$0x1]
        %v570 = vld [vmem:[#allocation10] sm:$0x1]
        %v571 = vld [vmem:[#allocation11] sm:$0x1]
        %v572 = vld [vmem:[#allocation7] sm:$0x1]
        %v573 = vld [vmem:[#allocation8] sm:$0x1]
        %v574 = vld [vmem:[%s10] sm:$0x1]
        %v575 = vld [vmem:[%s12] sm:$0x1]
        %v576 = vld [vmem:[%s3] sm:$0xf]
        %v577 = vld [vmem:[%s3 + $0x4] sm:$0xf]
        %v578 = vld [vmem:[%s3 + $0x8] sm:$0xf]
        %v579 = vld [vmem:[%s3 + $0xc] sm:$0xf]
        %v580 = vld [vmem:[%s5] sm:$0xf]
        %v581 = vld [vmem:[%s5 + $0x4] sm:$0xf]
        %v582 = vld [vmem:[%s5 + $0x8] sm:$0xf]
        %v583 = vld [vmem:[%s5 + $0xc] sm:$0xf]
        %v584 = vld [vmem:[%s9] sm:$0xf]
        %v585 = vld [vmem:[%s9 + $0x4] sm:$0xf]
        %v586 = vld [vmem:[%s9 + $0x8] sm:$0xf]
        %v587 = vld [vmem:[%s9 + $0xc] sm:$0xf]
        %v588 = vld [vmem:[%s11] sm:$0xf]
        %v589 = vld [vmem:[%s11 + $0x4] sm:$0xf]
        %v590 = vld [vmem:[%s11 + $0x8] sm:$0xf]
        %v591 = vld [vmem:[%s11 + $0xc] sm:$0xf]
        %v592 = vld [vmem:[%s11 + $0x10] sm:$0xf]
        %v593 = vld [vmem:[%s11 + $0x14] sm:$0xf]
        %v594 = vld [vmem:[%s11 + $0x18] sm:$0xf]
        %v595 = vld [vmem:[%s11 + $0x1c] sm:$0xf]
        %vm596 = vcmask 261120
        %v597 = vsel %vm596, %v567, 0.0
        %598 = vadd.xlane.f32.xlu0 %v597
        %v599 = vpop.xlane.xlu0 %598
        %v600 = vrcp.pop 32.0
        %v601 = vmul.f32 %v599, %v600
        %v602 = vsub.f32 %v567, %v601
        %v603 = vmul.f32 %v602, %v602
        %v604 = vsel %vm596, %v603, 0.0
        %605 = vadd.xlane.f32.xlu0 %v604
        %v606 = vpop.xlane.xlu0 %605
        %v607 = vmul.f32 %v606, %v600
        %v608 = vadd.f32 %v607, 1e-06
        %v609 = vrsqrt.pop %v608
        %v610 = vmul.f32 %v602, %v609
        %v612 = vlaneseq
        %v613 = vshrl.u32 %v612, 7
        %v614 = vsub.s32 0, %v613
        %v615 = vrot.slane %v568, %v614
        %v617 = vmul.f32 %v610, %v615
        %v619 = vlaneseq
        %v620 = vshrl.u32 %v619, 7
        %v621 = vsub.s32 0, %v620
        %v622 = vrot.slane %v569, %v621
        %v624 = vadd.f32 %v617, %v622
        %v625 = vpack.c.bf16 %v624, %v624
        %v627 = vlaneseq
        %v628 = vshrl.u32 %v627, 7
        %v629 = vsub.s32 0, %v628
        %v630 = vrot.slane %v572, %v629
        %v636 = vunpack.c.l.b16 %v576
        %v637 = vunpack.c.l.b16 %v577
        %v638 = vunpack.c.l.b16 %v578
        %v639 = vunpack.c.l.b16 %v579
        %v640 = vpack.c.b16 %v637, %v636
        %v641 = vpack.c.b16 %v639, %v638
        %v645 = vsel %vm596, %v625, 0
        %647 = vmatprep.subr.bf16.mxu0 0
        %648 = vmatpush1.bf16.msra.mxu0 0
        %649 = vmatprep.subr.bf16.mxu0 0
        %650 = vmatpush1.bf16.msra.mxu0 0
        %651 = vmatprep.subr.bf16.mxu0 0
        %652 = vmatpush1.bf16.msra.mxu0 0
        %653 = vmatprep.subr.bf16.mxu0 0
        %654 = vmatpush1.bf16.msra.mxu0 0
        %655 = vmatprep.subr.bf16.mxu0 0
        %656 = vmatpush1.bf16.msra.mxu0 0
        %657 = vmatprep.subr.bf16.mxu0 0
        %658 = vmatpush1.bf16.msra.mxu0 0
        %659 = vmatprep.subr.bf16.mxu0 0
        %660 = vmatpush1.bf16.msra.mxu0 %v641
        %661 = vmatprep.subr.bf16.mxu0 0
        %662 = vmatpush1.bf16.msra.mxu0 %v640
        %663 = vmatprep.subr.bf16.mxu0 0
        %664 = vmatpush2.bf16.msra.mxu0 0
        %665 = vmatprep.subr.bf16.mxu0 0
        %666 = vmatpush2.bf16.msra.mxu0 0
        %667 = vmatprep.subr.bf16.mxu0 0
        %668 = vmatpush2.bf16.msra.mxu0 0
        %669 = vmatprep.subr.bf16.mxu0 0
        %670 = vmatpush2.bf16.msra.mxu0 0
        %671 = vmatprep.subr.bf16.mxu0 0
        %672 = vmatpush2.bf16.msra.mxu0 0
        %673 = vmatprep.subr.bf16.mxu0 0
        %674 = vmatpush2.bf16.msra.mxu0 0
        %675 = vmatprep.subr.bf16.mxu0 0
        %676 = vmatpush2.bf16.msra.mxu0 0
        %677 = vmatprep.subr.bf16.mxu0 0
        %678 = vmatpush2.bf16.msra.mxu0 0
        %679 = vmatprep.mubr.bf16.mxu0 0
        %680 = vmatmul.mubr.bf16.gmra.mxu0 %v645
        %v681 = vpop.f32.mrf.mxu0
        %v682 = vadd.f32 %v630, %v681
        %v683 = vpop.f32.mrf.mxu0
        %v684 = vpop.f32.mrf.mxu0
        %v685 = vpop.f32.mrf.mxu0
        %686 = vdwg.mxu0
        %v687 = vpack.c.bf16 %v682, %v682
        %689 = vrot.lane.b32.xlu0 %v687, 96
        %v690 = vpop.permute.xlu0 %689
        %vm691 = vcmask 64512
        %v693 = vsel %vm691, %v687, 0
        %v696 = vsel %vm691, %v690, 0
        %698 = vmatprep.subr.bf16.mxu0 0
        %699 = vmatpush1.bf16.xpose.msra.mxu0 0
        %700 = vmatprep.subr.bf16.mxu0 0
        %701 = vmatpush1.bf16.xpose.msra.mxu0 0
        %702 = vmatprep.subr.bf16.mxu0 0
        %703 = vmatpush1.bf16.xpose.msra.mxu0 0
        %704 = vmatprep.subr.bf16.mxu0 0
        %705 = vmatpush1.bf16.xpose.msra.mxu0 0
        %706 = vmatprep.subr.bf16.mxu0 0
        %707 = vmatpush1.bf16.xpose.msra.mxu0 0
        %708 = vmatprep.subr.bf16.mxu0 0
        %709 = vmatpush1.bf16.xpose.msra.mxu0 0
        %710 = vmatprep.subr.bf16.mxu0 0
        %711 = vmatpush1.bf16.xpose.msra.mxu0 0
        %712 = vmatprep.subr.bf16.mxu0 0
        %713 = vmatpush1.bf16.xpose.msra.mxu0 %v696
        %714 = vmatprep.subr.bf16.mxu0 0
        %715 = vmatpush2.bf16.xpose.msra.mxu0 0
        %716 = vmatprep.subr.bf16.mxu0 0
        %717 = vmatpush2.bf16.xpose.msra.mxu0 0
        %718 = vmatprep.subr.bf16.mxu0 0
        %719 = vmatpush2.bf16.xpose.msra.mxu0 0
        %720 = vmatprep.subr.bf16.mxu0 0
        %721 = vmatpush2.bf16.xpose.msra.mxu0 0
        %722 = vmatprep.subr.bf16.mxu0 0
        %723 = vmatpush2.bf16.xpose.msra.mxu0 0
        %724 = vmatprep.subr.bf16.mxu0 0
        %725 = vmatpush2.bf16.xpose.msra.mxu0 0
        %726 = vmatprep.subr.bf16.mxu0 0
        %727 = vmatpush2.bf16.xpose.msra.mxu0 0
        %728 = vmatprep.subr.bf16.mxu0 0
        %729 = vmatpush2.bf16.xpose.msra.mxu0 0
        %730 = vmatprep.mubr.bf16.mxu0 0
        %731 = vmatmul.mubr.bf16.gmra.mxu0 %v693
        %v732 = vpop.f32.mrf.mxu0
        %v733 = vadd.f32 0.0, %v732
        %v734 = vpop.f32.mrf.mxu0
        %v735 = vpop.f32.mrf.mxu0
        %v736 = vpop.f32.mrf.mxu0
        %737 = vdwg.mxu0
        %v738 = vmul.f32 %v733, 0.35355338
        %v739 = vsel %vm691, %v738, -inf
        %740 = vmax.xlane.f32.xlu0 %v739
        %v741 = vpop.xlane.xlu0 %740
        %v742 = vsub.f32 %v738, %v741
        %v743 = vmul.f32 %v742, 1.442695
        %v744 = vpow.pop %v743
        %v745 = vsel %vm691, %v744, 0.0
        %746 = vadd.xlane.f32.xlu0 %v745
        %v747 = vpop.xlane.xlu0 %746
        %v748 = vrcp.pop %v747
        %v749 = vmul.f32 %v744, %v748
        %v750 = vpack.c.bf16 %v749, %v749
        %751 = vrot.lane.b32.xlu0 %v687, 64
        %v752 = vpop.permute.xlu0 %751
        %v754 = vsel %vm691, %v750, 0
        %vm756 = vcmask 1043456
        %v758 = vsel %vm756, %v752, 0
        %760 = vmatprep.subr.bf16.mxu0 0
        %761 = vmatpush1.bf16.msra.mxu0 0
        %762 = vmatprep.subr.bf16.mxu0 0
        %763 = vmatpush1.bf16.msra.mxu0 0
        %764 = vmatprep.subr.bf16.mxu0 0
        %765 = vmatpush1.bf16.msra.mxu0 0
        %766 = vmatprep.subr.bf16.mxu0 0
        %767 = vmatpush1.bf16.msra.mxu0 0
        %768 = vmatprep.subr.bf16.mxu0 0
        %769 = vmatpush1.bf16.msra.mxu0 0
        %770 = vmatprep.subr.bf16.mxu0 0
        %771 = vmatpush1.bf16.msra.mxu0 0
        %772 = vmatprep.subr.bf16.mxu0 0
        %773 = vmatpush1.bf16.msra.mxu0 0
        %774 = vmatprep.subr.bf16.mxu0 0
        %775 = vmatpush1.bf16.msra.mxu0 %v758
        %776 = vmatprep.subr.bf16.mxu0 0
        %777 = vmatpush2.bf16.msra.mxu0 0
        %778 = vmatprep.subr.bf16.mxu0 0
        %779 = vmatpush2.bf16.msra.mxu0 0
        %780 = vmatprep.subr.bf16.mxu0 0
        %781 = vmatpush2.bf16.msra.mxu0 0
        %782 = vmatprep.subr.bf16.mxu0 0
        %783 = vmatpush2.bf16.msra.mxu0 0
        %784 = vmatprep.subr.bf16.mxu0 0
        %785 = vmatpush2.bf16.msra.mxu0 0
        %786 = vmatprep.subr.bf16.mxu0 0
        %787 = vmatpush2.bf16.msra.mxu0 0
        %788 = vmatprep.subr.bf16.mxu0 0
        %789 = vmatpush2.bf16.msra.mxu0 0
        %790 = vmatprep.subr.bf16.mxu0 0
        %791 = vmatpush2.bf16.msra.mxu0 0
        %792 = vmatprep.mubr.bf16.mxu0 0
        %793 = vmatmul.mubr.bf16.gmra.mxu0 %v754
        %v794 = vpop.f32.mrf.mxu0
        %v795 = vadd.f32 0.0, %v794
        %v796 = vpop.f32.mrf.mxu0
        %v797 = vpop.f32.mrf.mxu0
        %v798 = vpop.f32.mrf.mxu0
        %799 = vdwg.mxu0
        %v800 = vpack.c.bf16 %v795, %v795
        %801 = vrot.lane.b32.xlu0 %v687, 120
        %v802 = vpop.permute.xlu0 %801
        %803 = vrot.lane.b32.xlu0 %v687, 88
        %v804 = vpop.permute.xlu0 %803
        %v806 = vsel %vm691, %v802, 0
        %v809 = vsel %vm691, %v804, 0
        %811 = vmatprep.subr.bf16.mxu0 0
        %812 = vmatpush1.bf16.xpose.msra.mxu0 0
        %813 = vmatprep.subr.bf16.mxu0 0
        %814 = vmatpush1.bf16.xpose.msra.mxu0 0
        %815 = vmatprep.subr.bf16.mxu0 0
        %816 = vmatpush1.bf16.xpose.msra.mxu0 0
        %817 = vmatprep.subr.bf16.mxu0 0
        %818 = vmatpush1.bf16.xpose.msra.mxu0 0
        %819 = vmatprep.subr.bf16.mxu0 0
        %820 = vmatpush1.bf16.xpose.msra.mxu0 0
        %821 = vmatprep.subr.bf16.mxu0 0
        %822 = vmatpush1.bf16.xpose.msra.mxu0 0
        %823 = vmatprep.subr.bf16.mxu0 0
        %824 = vmatpush1.bf16.xpose.msra.mxu0 0
        %825 = vmatprep.subr.bf16.mxu0 0
        %826 = vmatpush1.bf16.xpose.msra.mxu0 %v809
        %827 = vmatprep.subr.bf16.mxu0 0
        %828 = vmatpush2.bf16.xpose.msra.mxu0 0
        %829 = vmatprep.subr.bf16.mxu0 0
        %830 = vmatpush2.bf16.xpose.msra.mxu0 0
        %831 = vmatprep.subr.bf16.mxu0 0
        %832 = vmatpush2.bf16.xpose.msra.mxu0 0
        %833 = vmatprep.subr.bf16.mxu0 0
        %834 = vmatpush2.bf16.xpose.msra.mxu0 0
        %835 = vmatprep.subr.bf16.mxu0 0
        %836 = vmatpush2.bf16.xpose.msra.mxu0 0
        %837 = vmatprep.subr.bf16.mxu0 0
        %838 = vmatpush2.bf16.xpose.msra.mxu0 0
        %839 = vmatprep.subr.bf16.mxu0 0
        %840 = vmatpush2.bf16.xpose.msra.mxu0 0
        %841 = vmatprep.subr.bf16.mxu0 0
        %842 = vmatpush2.bf16.xpose.msra.mxu0 0
        %843 = vmatprep.mubr.bf16.mxu0 0
        %844 = vmatmul.mubr.bf16.gmra.mxu0 %v806
        %v845 = vpop.f32.mrf.mxu0
        %v846 = vadd.f32 0.0, %v845
        %v847 = vpop.f32.mrf.mxu0
        %v848 = vpop.f32.mrf.mxu0
        %v849 = vpop.f32.mrf.mxu0
        %850 = vdwg.mxu0
        %v851 = vmul.f32 %v846, 0.35355338
        %v852 = vsel %vm691, %v851, -inf
        %853 = vmax.xlane.f32.xlu0 %v852
        %v854 = vpop.xlane.xlu0 %853
        %v855 = vsub.f32 %v851, %v854
        %v856 = vmul.f32 %v855, 1.442695
        %v857 = vpow.pop %v856
        %v858 = vsel %vm691, %v857, 0.0
        %859 = vadd.xlane.f32.xlu0 %v858
        %v860 = vpop.xlane.xlu0 %859
        %v861 = vrcp.pop %v860
        %v862 = vmul.f32 %v857, %v861
        %v863 = vpack.c.bf16 %v862, %v862
        %864 = vrot.lane.b32.xlu0 %v687, 56
        %v865 = vpop.permute.xlu0 %864
        %v867 = vsel %vm691, %v863, 0
        %v870 = vsel %vm756, %v865, 0
        %872 = vmatprep.subr.bf16.mxu0 0
        %873 = vmatpush1.bf16.msra.mxu0 0
        %874 = vmatprep.subr.bf16.mxu0 0
        %875 = vmatpush1.bf16.msra.mxu0 0
        %876 = vmatprep.subr.bf16.mxu0 0
        %877 = vmatpush1.bf16.msra.mxu0 0
        %878 = vmatprep.subr.bf16.mxu0 0
        %879 = vmatpush1.bf16.msra.mxu0 0
        %880 = vmatprep.subr.bf16.mxu0 0
        %881 = vmatpush1.bf16.msra.mxu0 0
        %882 = vmatprep.subr.bf16.mxu0 0
        %883 = vmatpush1.bf16.msra.mxu0 0
        %884 = vmatprep.subr.bf16.mxu0 0
        %885 = vmatpush1.bf16.msra.mxu0 0
        %886 = vmatprep.subr.bf16.mxu0 0
        %887 = vmatpush1.bf16.msra.mxu0 %v870
        %888 = vmatprep.subr.bf16.mxu0 0
        %889 = vmatpush2.bf16.msra.mxu0 0
        %890 = vmatprep.subr.bf16.mxu0 0
        %891 = vmatpush2.bf16.msra.mxu0 0
        %892 = vmatprep.subr.bf16.mxu0 0
        %893 = vmatpush2.bf16.msra.mxu0 0
        %894 = vmatprep.subr.bf16.mxu0 0
        %895 = vmatpush2.bf16.msra.mxu0 0
        %896 = vmatprep.subr.bf16.mxu0 0
        %897 = vmatpush2.bf16.msra.mxu0 0
        %898 = vmatprep.subr.bf16.mxu0 0
        %899 = vmatpush2.bf16.msra.mxu0 0
        %900 = vmatprep.subr.bf16.mxu0 0
        %901 = vmatpush2.bf16.msra.mxu0 0
        %902 = vmatprep.subr.bf16.mxu0 0
        %903 = vmatpush2.bf16.msra.mxu0 0
        %904 = vmatprep.mubr.bf16.mxu0 0
        %905 = vmatmul.mubr.bf16.gmra.mxu0 %v867
        %v906 = vpop.f32.mrf.mxu0
        %v907 = vadd.f32 0.0, %v906
        %v908 = vpop.f32.mrf.mxu0
        %v909 = vpop.f32.mrf.mxu0
        %v910 = vpop.f32.mrf.mxu0
        %911 = vdwg.mxu0
        %v912 = vpack.c.bf16 %v907, %v907
        %v914 = vsel %vm691, %v912, 0
        %v917 = vsel %vm756, %v581, 0
        %919 = vmatprep.subr.bf16.mxu0 0
        %920 = vmatpush1.bf16.msra.mxu0 0
        %921 = vmatprep.subr.bf16.mxu0 0
        %922 = vmatpush1.bf16.msra.mxu0 0
        %923 = vmatprep.subr.bf16.mxu0 0
        %924 = vmatpush1.bf16.msra.mxu0 0
        %925 = vmatprep.subr.bf16.mxu0 0
        %926 = vmatpush1.bf16.msra.mxu0 0
        %927 = vmatprep.subr.bf16.mxu0 0
        %928 = vmatpush1.bf16.msra.mxu0 0
        %929 = vmatprep.subr.bf16.mxu0 0
        %930 = vmatpush1.bf16.msra.mxu0 0
        %931 = vmatprep.subr.bf16.mxu0 0
        %932 = vmatpush1.bf16.msra.mxu0 0
        %933 = vmatprep.subr.bf16.mxu0 0
        %934 = vmatpush1.bf16.msra.mxu0 %v917
        %935 = vmatprep.subr.bf16.mxu0 0
        %936 = vmatpush2.bf16.msra.mxu0 0
        %937 = vmatprep.subr.bf16.mxu0 0
        %938 = vmatpush2.bf16.msra.mxu0 0
        %939 = vmatprep.subr.bf16.mxu0 0
        %940 = vmatpush2.bf16.msra.mxu0 0
        %941 = vmatprep.subr.bf16.mxu0 0
        %942 = vmatpush2.bf16.msra.mxu0 0
        %943 = vmatprep.subr.bf16.mxu0 0
        %944 = vmatpush2.bf16.msra.mxu0 0
        %945 = vmatprep.subr.bf16.mxu0 0
        %946 = vmatpush2.bf16.msra.mxu0 0
        %947 = vmatprep.subr.bf16.mxu0 0
        %948 = vmatpush2.bf16.msra.mxu0 0
        %949 = vmatprep.subr.bf16.mxu0 0
        %950 = vmatpush2.bf16.msra.mxu0 0
        %951 = vmatprep.mubr.bf16.mxu0 0
        %952 = vmatmul.mubr.bf16.gmra.mxu0 %v914
        %v953 = vpop.f32.mrf.mxu0
        %v954 = vadd.f32 0.0, %v953
        %v955 = vpop.f32.mrf.mxu0
        %v956 = vpop.f32.mrf.mxu0
        %v957 = vpop.f32.mrf.mxu0
        %958 = vdwg.mxu0
        %v960 = vsel %vm691, %v800, 0
        %v963 = vsel %vm756, %v580, 0
        %965 = vmatprep.subr.bf16.mxu0 0
        %966 = vmatpush1.bf16.msra.mxu0 0
        %967 = vmatprep.subr.bf16.mxu0 0
        %968 = vmatpush1.bf16.msra.mxu0 0
        %969 = vmatprep.subr.bf16.mxu0 0
        %970 = vmatpush1.bf16.msra.mxu0 0
        %971 = vmatprep.subr.bf16.mxu0 0
        %972 = vmatpush1.bf16.msra.mxu0 0
        %973 = vmatprep.subr.bf16.mxu0 0
        %974 = vmatpush1.bf16.msra.mxu0 0
        %975 = vmatprep.subr.bf16.mxu0 0
        %976 = vmatpush1.bf16.msra.mxu0 0
        %977 = vmatprep.subr.bf16.mxu0 0
        %978 = vmatpush1.bf16.msra.mxu0 0
        %979 = vmatprep.subr.bf16.mxu0 0
        %980 = vmatpush1.bf16.msra.mxu0 %v963
        %981 = vmatprep.subr.bf16.mxu0 0
        %982 = vmatpush2.bf16.msra.mxu0 0
        %983 = vmatprep.subr.bf16.mxu0 0
        %984 = vmatpush2.bf16.msra.mxu0 0
        %985 = vmatprep.subr.bf16.mxu0 0
        %986 = vmatpush2.bf16.msra.mxu0 0
        %987 = vmatprep.subr.bf16.mxu0 0
        %988 = vmatpush2.bf16.msra.mxu0 0
        %989 = vmatprep.subr.bf16.mxu0 0
        %990 = vmatpush2.bf16.msra.mxu0 0
        %991 = vmatprep.subr.bf16.mxu0 0
        %992 = vmatpush2.bf16.msra.mxu0 0
        %993 = vmatprep.subr.bf16.mxu0 0
        %994 = vmatpush2.bf16.msra.mxu0 0
        %995 = vmatprep.subr.bf16.mxu0 0
        %996 = vmatpush2.bf16.msra.mxu0 0
        %997 = vmatprep.mubr.bf16.mxu0 0
        %998 = vmatmul.mubr.bf16.gmra.mxu0 %v960
        %v999 = vpop.f32.mrf.mxu0
        %v1000 = vadd.f32 %v954, %v999
        %v1001 = vpop.f32.mrf.mxu0
        %v1002 = vpop.f32.mrf.mxu0
        %v1003 = vpop.f32.mrf.mxu0
        %1004 = vdwg.mxu0
        %1005 = vrot.lane.b32.xlu0 %v687, 112
        %v1006 = vpop.permute.xlu0 %1005
        %1007 = vrot.lane.b32.xlu0 %v687, 80
        %v1008 = vpop.permute.xlu0 %1007
        %v1010 = vsel %vm691, %v1006, 0
        %v1013 = vsel %vm691, %v1008, 0
        %1015 = vmatprep.subr.bf16.mxu0 0
        %1016 = vmatpush1.bf16.xpose.msra.mxu0 0
        %1017 = vmatprep.subr.bf16.mxu0 0
        %1018 = vmatpush1.bf16.xpose.msra.mxu0 0
        %1019 = vmatprep.subr.bf16.mxu0 0
        %1020 = vmatpush1.bf16.xpose.msra.mxu0 0
        %1021 = vmatprep.subr.bf16.mxu0 0
        %1022 = vmatpush1.bf16.xpose.msra.mxu0 0
        %1023 = vmatprep.subr.bf16.mxu0 0
        %1024 = vmatpush1.bf16.xpose.msra.mxu0 0
        %1025 = vmatprep.subr.bf16.mxu0 0
        %1026 = vmatpush1.bf16.xpose.msra.mxu0 0
        %1027 = vmatprep.subr.bf16.mxu0 0
        %1028 = vmatpush1.bf16.xpose.msra.mxu0 0
        %1029 = vmatprep.subr.bf16.mxu0 0
        %1030 = vmatpush1.bf16.xpose.msra.mxu0 %v1013
        %1031 = vmatprep.subr.bf16.mxu0 0
        %1032 = vmatpush2.bf16.xpose.msra.mxu0 0
        %1033 = vmatprep.subr.bf16.mxu0 0
        %1034 = vmatpush2.bf16.xpose.msra.mxu0 0
        %1035 = vmatprep.subr.bf16.mxu0 0
        %1036 = vmatpush2.bf16.xpose.msra.mxu0 0
        %1037 = vmatprep.subr.bf16.mxu0 0
        %1038 = vmatpush2.bf16.xpose.msra.mxu0 0
        %1039 = vmatprep.subr.bf16.mxu0 0
        %1040 = vmatpush2.bf16.xpose.msra.mxu0 0
        %1041 = vmatprep.subr.bf16.mxu0 0
        %1042 = vmatpush2.bf16.xpose.msra.mxu0 0
        %1043 = vmatprep.subr.bf16.mxu0 0
        %1044 = vmatpush2.bf16.xpose.msra.mxu0 0
        %1045 = vmatprep.subr.bf16.mxu0 0
        %1046 = vmatpush2.bf16.xpose.msra.mxu0 0
        %1047 = vmatprep.mubr.bf16.mxu0 0
        %1048 = vmatmul.mubr.bf16.gmra.mxu0 %v1010
        %v1049 = vpop.f32.mrf.mxu0
        %v1050 = vadd.f32 0.0, %v1049
        %v1051 = vpop.f32.mrf.mxu0
        %v1052 = vpop.f32.mrf.mxu0
        %v1053 = vpop.f32.mrf.mxu0
        %1054 = vdwg.mxu0
        %v1055 = vmul.f32 %v1050, 0.35355338
        %v1056 = vsel %vm691, %v1055, -inf
        %1057 = vmax.xlane.f32.xlu0 %v1056
        %v1058 = vpop.xlane.xlu0 %1057
        %v1059 = vsub.f32 %v1055, %v1058
        %v1060 = vmul.f32 %v1059, 1.442695
        %v1061 = vpow.pop %v1060
        %v1062 = vsel %vm691, %v1061, 0.0
        %1063 = vadd.xlane.f32.xlu0 %v1062
        %v1064 = vpop.xlane.xlu0 %1063
        %v1065 = vrcp.pop %v1064
        %v1066 = vmul.f32 %v1061, %v1065
        %v1067 = vpack.c.bf16 %v1066, %v1066
        %1068 = vrot.lane.b32.xlu0 %v687, 48
        %v1069 = vpop.permute.xlu0 %1068
        %v1071 = vsel %vm691, %v1067, 0
        %v1074 = vsel %vm756, %v1069, 0
        %1076 = vmatprep.subr.bf16.mxu0 0
        %1077 = vmatpush1.bf16.msra.mxu0 0
        %1078 = vmatprep.subr.bf16.mxu0 0
        %1079 = vmatpush1.bf16.msra.mxu0 0
        %1080 = vmatprep.subr.bf16.mxu0 0
        %1081 = vmatpush1.bf16.msra.mxu0 0
        %1082 = vmatprep.subr.bf16.mxu0 0
        %1083 = vmatpush1.bf16.msra.mxu0 0
        %1084 = vmatprep.subr.bf16.mxu0 0
        %1085 = vmatpush1.bf16.msra.mxu0 0
        %1086 = vmatprep.subr.bf16.mxu0 0
        %1087 = vmatpush1.bf16.msra.mxu0 0
        %1088 = vmatprep.subr.bf16.mxu0 0
        %1089 = vmatpush1.bf16.msra.mxu0 0
        %1090 = vmatprep.subr.bf16.mxu0 0
        %1091 = vmatpush1.bf16.msra.mxu0 %v1074
        %1092 = vmatprep.subr.bf16.mxu0 0
        %1093 = vmatpush2.bf16.msra.mxu0 0
        %1094 = vmatprep.subr.bf16.mxu0 0
        %1095 = vmatpush2.bf16.msra.mxu0 0
        %1096 = vmatprep.subr.bf16.mxu0 0
        %1097 = vmatpush2.bf16.msra.mxu0 0
        %1098 = vmatprep.subr.bf16.mxu0 0
        %1099 = vmatpush2.bf16.msra.mxu0 0
        %1100 = vmatprep.subr.bf16.mxu0 0
        %1101 = vmatpush2.bf16.msra.mxu0 0
        %1102 = vmatprep.subr.bf16.mxu0 0
        %1103 = vmatpush2.bf16.msra.mxu0 0
        %1104 = vmatprep.subr.bf16.mxu0 0
        %1105 = vmatpush2.bf16.msra.mxu0 0
        %1106 = vmatprep.subr.bf16.mxu0 0
        %1107 = vmatpush2.bf16.msra.mxu0 0
        %1108 = vmatprep.mubr.bf16.mxu0 0
        %1109 = vmatmul.mubr.bf16.gmra.mxu0 %v1071
        %v1110 = vpop.f32.mrf.mxu0
        %v1111 = vadd.f32 0.0, %v1110
        %v1112 = vpop.f32.mrf.mxu0
        %v1113 = vpop.f32.mrf.mxu0
        %v1114 = vpop.f32.mrf.mxu0
        %1115 = vdwg.mxu0
        %v1116 = vpack.c.bf16 %v1111, %v1111
        %v1118 = vsel %vm691, %v1116, 0
        %v1121 = vsel %vm756, %v582, 0
        %1123 = vmatprep.subr.bf16.mxu0 0
        %1124 = vmatpush1.bf16.msra.mxu0 0
        %1125 = vmatprep.subr.bf16.mxu0 0
        %1126 = vmatpush1.bf16.msra.mxu0 0
        %1127 = vmatprep.subr.bf16.mxu0 0
        %1128 = vmatpush1.bf16.msra.mxu0 0
        %1129 = vmatprep.subr.bf16.mxu0 0
        %1130 = vmatpush1.bf16.msra.mxu0 0
        %1131 = vmatprep.subr.bf16.mxu0 0
        %1132 = vmatpush1.bf16.msra.mxu0 0
        %1133 = vmatprep.subr.bf16.mxu0 0
        %1134 = vmatpush1.bf16.msra.mxu0 0
        %1135 = vmatprep.subr.bf16.mxu0 0
        %1136 = vmatpush1.bf16.msra.mxu0 0
        %1137 = vmatprep.subr.bf16.mxu0 0
        %1138 = vmatpush1.bf16.msra.mxu0 %v1121
        %1139 = vmatprep.subr.bf16.mxu0 0
        %1140 = vmatpush2.bf16.msra.mxu0 0
        %1141 = vmatprep.subr.bf16.mxu0 0
        %1142 = vmatpush2.bf16.msra.mxu0 0
        %1143 = vmatprep.subr.bf16.mxu0 0
        %1144 = vmatpush2.bf16.msra.mxu0 0
        %1145 = vmatprep.subr.bf16.mxu0 0
        %1146 = vmatpush2.bf16.msra.mxu0 0
        %1147 = vmatprep.subr.bf16.mxu0 0
        %1148 = vmatpush2.bf16.msra.mxu0 0
        %1149 = vmatprep.subr.bf16.mxu0 0
        %1150 = vmatpush2.bf16.msra.mxu0 0
        %1151 = vmatprep.subr.bf16.mxu0 0
        %1152 = vmatpush2.bf16.msra.mxu0 0
        %1153 = vmatprep.subr.bf16.mxu0 0
        %1154 = vmatpush2.bf16.msra.mxu0 0
        %1155 = vmatprep.mubr.bf16.mxu0 0
        %1156 = vmatmul.mubr.bf16.gmra.mxu0 %v1118
        %v1157 = vpop.f32.mrf.mxu0
        %v1158 = vadd.f32 0.0, %v1157
        %v1159 = vpop.f32.mrf.mxu0
        %v1160 = vpop.f32.mrf.mxu0
        %v1161 = vpop.f32.mrf.mxu0
        %1162 = vdwg.mxu0
        %v1163 = vadd.f32 %v1000, %v1158
        %1164 = vrot.lane.b32.xlu0 %v687, 104
        %v1165 = vpop.permute.xlu0 %1164
        %1166 = vrot.lane.b32.xlu0 %v687, 72
        %v1167 = vpop.permute.xlu0 %1166
        %v1169 = vsel %vm691, %v1165, 0
        %v1172 = vsel %vm691, %v1167, 0
        %1174 = vmatprep.subr.bf16.mxu0 0
        %1175 = vmatpush1.bf16.xpose.msra.mxu0 0
        %1176 = vmatprep.subr.bf16.mxu0 0
        %1177 = vmatpush1.bf16.xpose.msra.mxu0 0
        %1178 = vmatprep.subr.bf16.mxu0 0
        %1179 = vmatpush1.bf16.xpose.msra.mxu0 0
        %1180 = vmatprep.subr.bf16.mxu0 0
        %1181 = vmatpush1.bf16.xpose.msra.mxu0 0
        %1182 = vmatprep.subr.bf16.mxu0 0
        %1183 = vmatpush1.bf16.xpose.msra.mxu0 0
        %1184 = vmatprep.subr.bf16.mxu0 0
        %1185 = vmatpush1.bf16.xpose.msra.mxu0 0
        %1186 = vmatprep.subr.bf16.mxu0 0
        %1187 = vmatpush1.bf16.xpose.msra.mxu0 0
        %1188 = vmatprep.subr.bf16.mxu0 0
        %1189 = vmatpush1.bf16.xpose.msra.mxu0 %v1172
        %1190 = vmatprep.subr.bf16.mxu0 0
        %1191 = vmatpush2.bf16.xpose.msra.mxu0 0
        %1192 = vmatprep.subr.bf16.mxu0 0
        %1193 = vmatpush2.bf16.xpose.msra.mxu0 0
        %1194 = vmatprep.subr.bf16.mxu0 0
        %1195 = vmatpush2.bf16.xpose.msra.mxu0 0
        %1196 = vmatprep.subr.bf16.mxu0 0
        %1197 = vmatpush2.bf16.xpose.msra.mxu0 0
        %1198 = vmatprep.subr.bf16.mxu0 0
        %1199 = vmatpush2.bf16.xpose.msra.mxu0 0
        %1200 = vmatprep.subr.bf16.mxu0 0
        %1201 = vmatpush2.bf16.xpose.msra.mxu0 0
        %1202 = vmatprep.subr.bf16.mxu0 0
        %1203 = vmatpush2.bf16.xpose.msra.mxu0 0
        %1204 = vmatprep.subr.bf16.mxu0 0
        %1205 = vmatpush2.bf16.xpose.msra.mxu0 0
        %1206 = vmatprep.mubr.bf16.mxu0 0
        %1207 = vmatmul.mubr.bf16.gmra.mxu0 %v1169
        %v1208 = vpop.f32.mrf.mxu0
        %v1209 = vadd.f32 0.0, %v1208
        %v1210 = vpop.f32.mrf.mxu0
        %v1211 = vpop.f32.mrf.mxu0
        %v1212 = vpop.f32.mrf.mxu0
        %1213 = vdwg.mxu0
        %v1214 = vmul.f32 %v1209, 0.35355338
        %v1215 = vsel %vm691, %v1214, -inf
        %1216 = vmax.xlane.f32.xlu0 %v1215
        %v1217 = vpop.xlane.xlu0 %1216
        %v1218 = vsub.f32 %v1214, %v1217
        %v1219 = vmul.f32 %v1218, 1.442695
        %v1220 = vpow.pop %v1219
        %v1221 = vsel %vm691, %v1220, 0.0
        %1222 = vadd.xlane.f32.xlu0 %v1221
        %v1223 = vpop.xlane.xlu0 %1222
        %v1224 = vrcp.pop %v1223
        %v1225 = vmul.f32 %v1220, %v1224
        %v1226 = vpack.c.bf16 %v1225, %v1225
        %1227 = vrot.lane.b32.xlu0 %v687, 40
        %v1228 = vpop.permute.xlu0 %1227
        %v1230 = vsel %vm691, %v1226, 0
        %v1233 = vsel %vm756, %v1228, 0
        %1235 = vmatprep.subr.bf16.mxu0 0
        %1236 = vmatpush1.bf16.msra.mxu0 0
        %1237 = vmatprep.subr.bf16.mxu0 0
        %1238 = vmatpush1.bf16.msra.mxu0 0
        %1239 = vmatprep.subr.bf16.mxu0 0
        %1240 = vmatpush1.bf16.msra.mxu0 0
        %1241 = vmatprep.subr.bf16.mxu0 0
        %1242 = vmatpush1.bf16.msra.mxu0 0
        %1243 = vmatprep.subr.bf16.mxu0 0
        %1244 = vmatpush1.bf16.msra.mxu0 0
        %1245 = vmatprep.subr.bf16.mxu0 0
        %1246 = vmatpush1.bf16.msra.mxu0 0
        %1247 = vmatprep.subr.bf16.mxu0 0
        %1248 = vmatpush1.bf16.msra.mxu0 0
        %1249 = vmatprep.subr.bf16.mxu0 0
        %1250 = vmatpush1.bf16.msra.mxu0 %v1233
        %1251 = vmatprep.subr.bf16.mxu0 0
        %1252 = vmatpush2.bf16.msra.mxu0 0
        %1253 = vmatprep.subr.bf16.mxu0 0
        %1254 = vmatpush2.bf16.msra.mxu0 0
        %1255 = vmatprep.subr.bf16.mxu0 0
        %1256 = vmatpush2.bf16.msra.mxu0 0
        %1257 = vmatprep.subr.bf16.mxu0 0
        %1258 = vmatpush2.bf16.msra.mxu0 0
        %1259 = vmatprep.subr.bf16.mxu0 0
        %1260 = vmatpush2.bf16.msra.mxu0 0
        %1261 = vmatprep.subr.bf16.mxu0 0
        %1262 = vmatpush2.bf16.msra.mxu0 0
        %1263 = vmatprep.subr.bf16.mxu0 0
        %1264 = vmatpush2.bf16.msra.mxu0 0
        %1265 = vmatprep.subr.bf16.mxu0 0
        %1266 = vmatpush2.bf16.msra.mxu0 0
        %1267 = vmatprep.mubr.bf16.mxu0 0
        %1268 = vmatmul.mubr.bf16.gmra.mxu0 %v1230
        %v1269 = vpop.f32.mrf.mxu0
        %v1270 = vadd.f32 0.0, %v1269
        %v1271 = vpop.f32.mrf.mxu0
        %v1272 = vpop.f32.mrf.mxu0
        %v1273 = vpop.f32.mrf.mxu0
        %1274 = vdwg.mxu0
        %v1275 = vpack.c.bf16 %v1270, %v1270
        %v1277 = vsel %vm691, %v1275, 0
        %v1280 = vsel %vm756, %v583, 0
        %1282 = vmatprep.subr.bf16.mxu0 0
        %1283 = vmatpush1.bf16.msra.mxu0 0
        %1284 = vmatprep.subr.bf16.mxu0 0
        %1285 = vmatpush1.bf16.msra.mxu0 0
        %1286 = vmatprep.subr.bf16.mxu0 0
        %1287 = vmatpush1.bf16.msra.mxu0 0
        %1288 = vmatprep.subr.bf16.mxu0 0
        %1289 = vmatpush1.bf16.msra.mxu0 0
        %1290 = vmatprep.subr.bf16.mxu0 0
        %1291 = vmatpush1.bf16.msra.mxu0 0
        %1292 = vmatprep.subr.bf16.mxu0 0
        %1293 = vmatpush1.bf16.msra.mxu0 0
        %1294 = vmatprep.subr.bf16.mxu0 0
        %1295 = vmatpush1.bf16.msra.mxu0 0
        %1296 = vmatprep.subr.bf16.mxu0 0
        %1297 = vmatpush1.bf16.msra.mxu0 %v1280
        %1298 = vmatprep.subr.bf16.mxu0 0
        %1299 = vmatpush2.bf16.msra.mxu0 0
        %1300 = vmatprep.subr.bf16.mxu0 0
        %1301 = vmatpush2.bf16.msra.mxu0 0
        %1302 = vmatprep.subr.bf16.mxu0 0
        %1303 = vmatpush2.bf16.msra.mxu0 0
        %1304 = vmatprep.subr.bf16.mxu0 0
        %1305 = vmatpush2.bf16.msra.mxu0 0
        %1306 = vmatprep.subr.bf16.mxu0 0
        %1307 = vmatpush2.bf16.msra.mxu0 0
        %1308 = vmatprep.subr.bf16.mxu0 0
        %1309 = vmatpush2.bf16.msra.mxu0 0
        %1310 = vmatprep.subr.bf16.mxu0 0
        %1311 = vmatpush2.bf16.msra.mxu0 0
        %1312 = vmatprep.subr.bf16.mxu0 0
        %1313 = vmatpush2.bf16.msra.mxu0 0
        %1314 = vmatprep.mubr.bf16.mxu0 0
        %1315 = vmatmul.mubr.bf16.gmra.mxu0 %v1277
        %v1316 = vpop.f32.mrf.mxu0
        %v1317 = vadd.f32 0.0, %v1316
        %v1318 = vpop.f32.mrf.mxu0
        %v1319 = vpop.f32.mrf.mxu0
        %v1320 = vpop.f32.mrf.mxu0
        %1321 = vdwg.mxu0
        %v1322 = vadd.f32 %v1163, %v1317
        %v1324 = vlaneseq
        %v1325 = vshrl.u32 %v1324, 7
        %v1326 = vsub.s32 0, %v1325
        %v1327 = vrot.slane %v573, %v1326
        %v1329 = vadd.f32 %v1322, %v1327
        %v1330 = vadd.f32 %v1329, %v567
        %v1331 = vsel %vm596, %v1330, 0.0
        %1332 = vadd.xlane.f32.xlu0 %v1331
        %v1333 = vpop.xlane.xlu0 %1332
        %v1334 = vmul.f32 %v1333, %v600
        %v1335 = vsub.f32 %v1330, %v1334
        %v1336 = vmul.f32 %v1335, %v1335
        %v1337 = vsel %vm596, %v1336, 0.0
        %1338 = vadd.xlane.f32.xlu0 %v1337
        %v1339 = vpop.xlane.xlu0 %1338
        %v1340 = vmul.f32 %v1339, %v600
        %v1341 = vadd.f32 %v1340, 1e-06
        %v1342 = vrsqrt.pop %v1341
        %v1343 = vmul.f32 %v1335, %v1342
        %v1345 = vlaneseq
        %v1346 = vshrl.u32 %v1345, 7
        %v1347 = vsub.s32 0, %v1346
        %v1348 = vrot.slane %v570, %v1347
        %v1350 = vmul.f32 %v1343, %v1348
        %v1352 = vlaneseq
        %v1353 = vshrl.u32 %v1352, 7
        %v1354 = vsub.s32 0, %v1353
        %v1355 = vrot.slane %v571, %v1354
        %v1357 = vadd.f32 %v1350, %v1355
        %v1358 = vpack.c.bf16 %v1357, %v1357
        %v1360 = vlaneseq
        %v1361 = vshrl.u32 %v1360, 7
        %v1362 = vsub.s32 0, %v1361
        %v1363 = vrot.slane %v574, %v1362
        %v1369 = vunpack.c.l.b16 %v584
        %v1370 = vunpack.c.l.b16 %v585
        %v1371 = vunpack.c.l.b16 %v586
        %v1372 = vunpack.c.l.b16 %v587
        %v1373 = vpack.c.b16 %v1370, %v1369
        %v1374 = vpack.c.b16 %v1372, %v1371
        %v1378 = vsel %vm596, %v1358, 0
        %1380 = vmatprep.subr.bf16.mxu0 0
        %1381 = vmatpush1.bf16.msra.mxu0 0
        %1382 = vmatprep.subr.bf16.mxu0 0
        %1383 = vmatpush1.bf16.msra.mxu0 0
        %1384 = vmatprep.subr.bf16.mxu0 0
        %1385 = vmatpush1.bf16.msra.mxu0 0
        %1386 = vmatprep.subr.bf16.mxu0 0
        %1387 = vmatpush1.bf16.msra.mxu0 0
        %1388 = vmatprep.subr.bf16.mxu0 0
        %1389 = vmatpush1.bf16.msra.mxu0 0
        %1390 = vmatprep.subr.bf16.mxu0 0
        %1391 = vmatpush1.bf16.msra.mxu0 0
        %1392 = vmatprep.subr.bf16.mxu0 0
        %1393 = vmatpush1.bf16.msra.mxu0 %v1374
        %1394 = vmatprep.subr.bf16.mxu0 0
        %1395 = vmatpush1.bf16.msra.mxu0 %v1373
        %1396 = vmatprep.subr.bf16.mxu0 0
        %1397 = vmatpush2.bf16.msra.mxu0 0
        %1398 = vmatprep.subr.bf16.mxu0 0
        %1399 = vmatpush2.bf16.msra.mxu0 0
        %1400 = vmatprep.subr.bf16.mxu0 0
        %1401 = vmatpush2.bf16.msra.mxu0 0
        %1402 = vmatprep.subr.bf16.mxu0 0
        %1403 = vmatpush2.bf16.msra.mxu0 0
        %1404 = vmatprep.subr.bf16.mxu0 0
        %1405 = vmatpush2.bf16.msra.mxu0 0
        %1406 = vmatprep.subr.bf16.mxu0 0
        %1407 = vmatpush2.bf16.msra.mxu0 0
        %1408 = vmatprep.subr.bf16.mxu0 0
        %1409 = vmatpush2.bf16.msra.mxu0 0
        %1410 = vmatprep.subr.bf16.mxu0 0
        %1411 = vmatpush2.bf16.msra.mxu0 0
        %1412 = vmatprep.mubr.bf16.mxu0 0
        %1413 = vmatmul.mubr.bf16.gmra.mxu0 %v1378
        %v1414 = vpop.f32.mrf.mxu0
        %v1415 = vadd.f32 %v1363, %v1414
        %v1416 = vpop.f32.mrf.mxu0
        %v1417 = vpop.f32.mrf.mxu0
        %v1418 = vpop.f32.mrf.mxu0
        %1419 = vdwg.mxu0
        %v1420 = vmul.f32 %v1415, 0.5
        %v1421 = vmul.f32 %v1415, 0.70710677
        %v1422 = verf.f32.pop %v1421
        %v1423 = vadd.f32 %v1422, 1.0
        %v1424 = vmul.f32 %v1420, %v1423
        %v1425 = vpack.c.bf16 %v1424, %v1424
        %v1427 = vlaneseq
        %v1428 = vshrl.u32 %v1427, 7
        %v1429 = vsub.s32 0, %v1428
        %v1430 = vrot.slane %v575, %v1429
        %v1440 = vunpack.c.l.b16 %v588
        %v1441 = vunpack.c.l.b16 %v589
        %v1442 = vunpack.c.l.b16 %v590
        %v1443 = vunpack.c.l.b16 %v591
        %v1444 = vunpack.c.l.b16 %v592
        %v1445 = vunpack.c.l.b16 %v593
        %v1446 = vunpack.c.l.b16 %v594
        %v1447 = vunpack.c.l.b16 %v595
        %v1448 = vpack.c.b16 %v1441, %v1440
        %v1449 = vpack.c.b16 %v1443, %v1442
        %v1450 = vpack.c.b16 %v1445, %v1444
        %v1451 = vpack.c.b16 %v1447, %v1446
        %vm1456 = vcmask 523264
        %v1458 = vsel %vm1456, %v1425, 0
        %1460 = vmatprep.subr.bf16.mxu0 0
        %1461 = vmatpush1.bf16.msra.mxu0 0
        %1462 = vmatprep.subr.bf16.mxu0 0
        %1463 = vmatpush1.bf16.msra.mxu0 0
        %1464 = vmatprep.subr.bf16.mxu0 0
        %1465 = vmatpush1.bf16.msra.mxu0 0
        %1466 = vmatprep.subr.bf16.mxu0 0
        %1467 = vmatpush1.bf16.msra.mxu0 0
        %1468 = vmatprep.subr.bf16.mxu0 0
        %1469 = vmatpush1.bf16.msra.mxu0 %v1451
        %1470 = vmatprep.subr.bf16.mxu0 0
        %1471 = vmatpush1.bf16.msra.mxu0 %v1450
        %1472 = vmatprep.subr.bf16.mxu0 0
        %1473 = vmatpush1.bf16.msra.mxu0 %v1449
        %1474 = vmatprep.subr.bf16.mxu0 0
        %1475 = vmatpush1.bf16.msra.mxu0 %v1448
        %1476 = vmatprep.subr.bf16.mxu0 0
        %1477 = vmatpush2.bf16.msra.mxu0 0
        %1478 = vmatprep.subr.bf16.mxu0 0
        %1479 = vmatpush2.bf16.msra.mxu0 0
        %1480 = vmatprep.subr.bf16.mxu0 0
        %1481 = vmatpush2.bf16.msra.mxu0 0
        %1482 = vmatprep.subr.bf16.mxu0 0
        %1483 = vmatpush2.bf16.msra.mxu0 0
        %1484 = vmatprep.subr.bf16.mxu0 0
        %1485 = vmatpush2.bf16.msra.mxu0 0
        %1486 = vmatprep.subr.bf16.mxu0 0
        %1487 = vmatpush2.bf16.msra.mxu0 0
        %1488 = vmatprep.subr.bf16.mxu0 0
        %1489 = vmatpush2.bf16.msra.mxu0 0
        %1490 = vmatprep.subr.bf16.mxu0 0
        %1491 = vmatpush2.bf16.msra.mxu0 0
        %1492 = vmatprep.mubr.bf16.mxu0 0
        %1493 = vmatmul.mubr.bf16.gmra.mxu0 %v1458
        %v1494 = vpop.f32.mrf.mxu0
        %v1495 = vadd.f32 %v1430, %v1494
        %v1496 = vpop.f32.mrf.mxu0
        %v1497 = vpop.f32.mrf.mxu0
        %v1498 = vpop.f32.mrf.mxu0
        %1499 = vdwg.mxu0
        %v1500 = vadd.f32 %v1330, %v1495
        %1501 = vst.msk [vmem:[%s561] sm:$0xff] %vm596, %v1500
        %s1502 = sand.u32 %s361, 1
        %s1503 = scalar_lea.sflag [#allocation4], %s1502
        %s1504 = sand.u32 %s361, 1
        %s1505 = smul.addr %s1504, 8
        %s1506 = scalar_lea.vmem [#allocation13], %s1505
        // Predicated region
        $region105: #{tpu_custom_call.1} parent=79 // pred_check
          %p1507 = pneg %p371
        $region106: #{tpu_custom_call.1} parent=79 // pred_check_branch
          %1509 = sbr.rel (%p1507) target = $region108
        $region107: #{tpu_custom_call.1} parent=79 // pred_region
          %s1511 = ssub.s32 128, 128
          %1512 = vsyncadd %s1503, %s1511
          %s1513 = smul.addr %s33, 128
          %s1514 = scalar_lea.hbm %s15, %s1513
          %s1516 = sshll.u32 %s1506, 4
          %s1517 = int_to_ptr.vmem [resolvable:$true] %s1516
          %1519 = dma.vmem_to_hbm [thread:$0]  %s1517, 128, %s1514, %s1503
        $region108: #{tpu_custom_call.1} parent=79 // pred_fallthru
          _
      $region80: #{tpu_custom_call.1} parent=5 // pred_fallthru
        _
      %p1520 = scmp.le.s32.totalorder 2, %s28
      // Predicated region
      $region109: #{tpu_custom_call.1} parent=5 // pred_check
        %p1521 = pneg %p1520
      $region110: #{tpu_custom_call.1} parent=5 // pred_check_branch
        %1523 = sbr.rel (%p1521) target = $region112
      $region111: #{tpu_custom_call.1} parent=5 // pred_region
        %s1524 = ssub.s32 %s28, 2
        // Predicated region
        $region113: #{tpu_custom_call.1} parent=111 // pred_check
          %p1525 = pneg %p377
        $region114: #{tpu_custom_call.1} parent=111 // pred_check_branch
          %1527 = sbr.rel (%p1525) target = $region116
        $region115: #{tpu_custom_call.1} parent=111 // pred_region
          %s1528 = sand.u32 %s362, 1
          %s1529 = scalar_lea.sflag [#allocation4], %s1528
          %s1530 = sand.u32 %s362, 1
          %s1531 = smul.addr %s1530, 8
          %s1532 = scalar_lea.vmem [#allocation13], %s1531
          %1533 = dma.done %s1529, 128
        $region116: #{tpu_custom_call.1} parent=111 // pred_fallthru
          _
      $region112: #{tpu_custom_call.1} parent=5 // pred_fallthru
        _
    $region6: #{tpu_custom_call.1} parent=1 // loop_footer
      %s32 = sadd.s32 1, %s28
    $region7: #{tpu_custom_call.1} parent=1 // loop_footer_branch
      %27 = sbr.rel target = $region3
    $region8: #{tpu_custom_call.1} parent=1 // loop_exit
      _
    %1534 = vsyncpa [#allocation3], 1
    %s1535 = scalar_lea.sflag [#allocation3], 1
    %1536 = vsyncpa %s1535, 1
    %1537 = vsyncpa [#allocation6], 1
    %1538 = vsyncpa [#allocation9], 1
    %1539 = vsyncpa [#allocation12], 1
    %1540 = vsyncpa [#allocation4], 1
    %s1541 = scalar_lea.sflag [#allocation4], 1
    %1542 = vsyncpa %s1541, 1

</llo_original>
